<compile_context>
chip_gen: v7x
topology: tpu7x:2x2x1
jax: 0.10.0
libtpu: 0.0.40
codegen_flags: <defaults>
</compile_context>

<pallas_src>
import functools
import math

import jax
import jax.numpy as jnp
from jax import lax
from jax.experimental import pallas as pl
from jax.experimental.pallas import tpu as pltpu

# Plain Python floats => weak-typed literals inside the trace (never captured).
_NEG_INF = -1e30
_VALID_FLOOR = -1e29


def _bootstrap_bce_kernel(pred_ref, target_ref, out_ref, *, k,
                          assume_binary_targets):
    # In-kernel casts (cheap VPU work); HBM traffic stays at input width.
    p = pred_ref[...].astype(jnp.float32)    # (Bt, R, 128)
    t = target_ref[...].astype(jnp.float32)  # (Bt, R, 128)

    # One log per element: pick p (target==1) or 1-p (target==0), then log.
    q = jnp.where(t == 1.0, p, 1.0 - p)
    per_elem = -jnp.log(q)
    if not assume_binary_targets:
        valid = jnp.logical_or(t == 0.0, t == 1.0)
        per_elem = jnp.where(valid, per_elem, _NEG_INF)

    # ---- stage 1: per-(sample, lane) candidate extraction with tie counts ----
    # K sublane-direction (axis=1) max passes.  Each pass removes ALL copies of
    # the current per-lane max and records (value, multiplicity), so the
    # candidate buffer covers each lane's full top-K multiset exactly.
    work = per_elem
    cand_vals = []
    cand_cnts = []
    for _ in range(k):
        m = jnp.max(work, axis=1, keepdims=True)                    # (Bt,1,128)
        eq = work == m                                              # (Bt,R,128)
        cnt = jnp.sum(eq.astype(jnp.float32), axis=1, keepdims=True)
        work = jnp.where(eq, _NEG_INF, work)
        cand_vals.append(m)
        cand_cnts.append(cnt)
    cand_v = jnp.concatenate(cand_vals, axis=1)                     # (Bt,K,128)
    cand_c = jnp.concatenate(cand_cnts, axis=1)                     # (Bt,K,128)

    # ---- stage 2: exact tie-aware top-K on the tiny candidate buffer ----
    v0 = jnp.max(cand_v, axis=(1, 2), keepdims=True)                # (Bt,1,1)
    zero = jnp.zeros_like(v0)   # exact 0 even if v0 is +inf (no v0*0.0 NaN)

    def body(_, carry):
        v, s, rem = carry
        eq = cand_v == v        # single read of cand_v shared by both
        lt = cand_v < v         # reductions below (fused compare pass)
        mult = jnp.sum(jnp.where(eq, cand_c, 0.0), axis=(1, 2), keepdims=True)
        take = jnp.minimum(mult, rem)
        if not assume_binary_targets:
            # Never credit the sentinel (sample with fewer than K valid elems).
            take = jnp.where(v > _VALID_FLOOR, take, 0.0)
        s = s + take * v
        rem = rem - take
        v = jnp.max(jnp.where(lt, cand_v, _NEG_INF), axis=(1, 2), keepdims=True)
        return (v, s, rem)

    _, topk_sum, _ = lax.fori_loop(
        0, k, body, (v0, zero, zero + float(k)), unroll=True
    )

    sample_loss = topk_sum / float(k)                               # (Bt,1,1)
    # Lane-dense per-sample output block (full unmasked vector store).
    out_ref[...] = jnp.broadcast_to(sample_loss, out_ref.shape)


def _pick_samples_per_step(batch, rows, in_bytes_per_elem):
    """Pack samples per grid step, keeping >= 2 steps for v7x's two TCs."""
    # Approx per-sample working set: raw input tile + in-kernel f32 temps.
    per_sample = rows * 128 * (in_bytes_per_elem + 4 * 4)
    budget = 4 << 20
    cap = max(1, budget // max(per_sample, 1))
    best = 1
    for bt in range(1, batch + 1):
        if batch % bt != 0 or bt > cap:
            continue
        if batch >= 2 and batch // bt < 2:
            continue  # keep the grid splittable across two TensorCores
        best = max(best, bt)
    return best


def _vmem_limit_bytes(bt, rows, in_bytes_per_elem):
    """Explicit scoped-VMEM limit: input buffers + f32 working set + headroom."""
    tile_in = bt * rows * 128 * in_bytes_per_elem      # pred + target, 1 buffer
    f32_ws = bt * rows * 128 * 4 * 4                   # p, t casts + q/per_elem/work
    out = bt * 128 * 4 * 2
    needed = 2 * tile_in + f32_ws + out + (2 << 20)    # 2x: double-buffered inputs
    try:
        total_vmem = pltpu.get_tpu_info().vmem_capacity_bytes
    except Exception:
        total_vmem = 64 << 20                          # conservative (v7x-sized)
    cap = min(total_vmem - (16 << 20), 100 << 20)      # ~48 MiB v7x, ~100 MiB v5e/v6e
    return int(min(cap, max(needed, 32 << 20)))


def bootstrap_bce_loss_2d(pred, target, k, *, assume_binary_targets=False):
    """pred, target: NCHW arrays; pred in (0,1), target in {0,1}."""
    B = pred.shape[0]
    N = math.prod(pred.shape[1:])
    assert N % 128 == 0, "flattened per-sample size must be a multiple of 128"
    R = N // 128

    # Reshape only — no dtype widening in HBM.
    pred_r = pred.reshape(B, R, 128)
    target_r = target.reshape(B, R, 128)

    in_bytes = pred_r.dtype.itemsize + target_r.dtype.itemsize
    bt = _pick_samples_per_step(B, R, in_bytes)
    vmem_limit = _vmem_limit_bytes(bt, R, in_bytes)

    kernel = functools.partial(
        _bootstrap_bce_kernel, k=k, assume_binary_targets=assume_binary_targets
    )

    per_sample = pl.pallas_call(
        kernel,
        out_shape=jax.ShapeDtypeStruct((B, 1, 128), jnp.float32),
        grid=(B // bt,),
        in_specs=[
            pl.BlockSpec((bt, R, 128), lambda b: (b, 0, 0)),
            pl.BlockSpec((bt, R, 128), lambda b: (b, 0, 0)),
        ],
        out_specs=pl.BlockSpec((bt, 1, 128), lambda b: (b, 0, 0)),
        compiler_params=pltpu.CompilerParams(
            dimension_semantics=("parallel",),
            vmem_limit_bytes=vmem_limit,
        ),
    )(pred_r, target_r)

    return jnp.mean(per_sample[:, 0, 0])


def _reference_loss(pred, target, k):
    # Pure-JAX reference mirroring the PyTorch module (targets strictly 0/1).
    B = pred.shape[0]
    p = pred.reshape(B, -1).astype(jnp.float32)
    t = target.reshape(B, -1).astype(jnp.float32)
    elem = jnp.where(t == 1.0, -jnp.log(p), -jnp.log(1.0 - p))
    topk, _ = lax.top_k(elem, k)
    return jnp.mean(jnp.sum(topk, axis=-1) / k)


if __name__ == "__main__":
    key = jax.random.PRNGKey(0)
    k_pred, k_tgt = jax.random.split(key)

    B, C, H, W = 2, 4, 16, 16
    K = 16

    logits = jax.random.normal(k_pred, (B, C, H, W), dtype=jnp.float32)
    pred = jax.nn.sigmoid(logits)                                   # in (0, 1)
    target = (jax.random.uniform(k_tgt, (B, C, H, W)) > 0.5).astype(jnp.float32)

    ref = jax.block_until_ready(_reference_loss(pred, target, K))

    # General path (handles non-{0,1} targets by exclusion, like the module).
    loss = jax.block_until_ready(bootstrap_bce_loss_2d(pred, target, K))
    assert jnp.allclose(loss, ref, rtol=1e-5, atol=1e-5), (loss, ref)

    # Fast path: targets guaranteed binary (drops the validity mask/guard).
    loss_fast = jax.block_until_ready(
        bootstrap_bce_loss_2d(pred, target, K, assume_binary_targets=True)
    )
    assert jnp.allclose(loss_fast, ref, rtol=1e-5, atol=1e-5), (loss_fast, ref)

    print("KERNEL_OK")
</pallas_src>

<mosaic_0001>
module attributes {stable_mosaic.version = 11 : i64} {
  func.func @_bootstrap_bce_kernel(%arg0: i32, %arg1: memref<1x8x128xf32, #tpu.memory_space<vmem>>, %arg2: memref<1x8x128xf32, #tpu.memory_space<vmem>>, %arg3: memref<1x1x128xf32, #tpu.memory_space<vmem>>) attributes {dimension_semantics = [#tpu.dimension_semantics<parallel>], iteration_bounds = array<i64: 2>, scalar_prefetch = 0 : i64, scratch_operands = 0 : i64, tpu.core_type = #tpu.core_type<tc>, window_params = [{transform_indices = @transform_0, window_bounds = array<i64: 1, 8, 128>}, {transform_indices = @transform_1, window_bounds = array<i64: 1, 8, 128>}, {transform_indices = @transform_2, window_bounds = array<i64: 1, 1, 128>}]} {
    %c0 = arith.constant 0 : index
    %c0_0 = arith.constant 0 : index
    %c0_1 = arith.constant 0 : index
    %0 = vector.load %arg1[%c0, %c0_0, %c0_1] : memref<1x8x128xf32, #tpu.memory_space<vmem>>, vector<1x8x128xf32>
    %c0_2 = arith.constant 0 : index
    %c0_3 = arith.constant 0 : index
    %c0_4 = arith.constant 0 : index
    %1 = vector.load %arg2[%c0_2, %c0_3, %c0_4] : memref<1x8x128xf32, #tpu.memory_space<vmem>>, vector<1x8x128xf32>
    %cst = arith.constant 1.000000e+00 : f32
    %2 = vector.broadcast %cst : f32 to vector<1x8x128xf32>
    %3 = arith.cmpf oeq, %1, %2 : vector<1x8x128xf32>
    %cst_5 = arith.constant 1.000000e+00 : f32
    %4 = vector.broadcast %cst_5 : f32 to vector<1x8x128xf32>
    %5 = arith.subf %4, %0 : vector<1x8x128xf32>
    %6 = arith.select %3, %0, %5 : vector<1x8x128xi1>, vector<1x8x128xf32>
    %7 = math.log %6 : vector<1x8x128xf32>
    %cst_6 = arith.constant 0.000000e+00 : f32
    %8 = vector.broadcast %cst_6 : f32 to vector<1x8x128xf32>
    %9 = arith.subf %8, %7 : vector<1x8x128xf32>
    %cst_7 = arith.constant 0.000000e+00 : f32
    %10 = vector.broadcast %cst_7 : f32 to vector<1x8x128xf32>
    %11 = arith.cmpf oeq, %1, %10 : vector<1x8x128xf32>
    %cst_8 = arith.constant 1.000000e+00 : f32
    %12 = vector.broadcast %cst_8 : f32 to vector<1x8x128xf32>
    %13 = arith.cmpf oeq, %1, %12 : vector<1x8x128xf32>
    %14 = arith.ori %11, %13 : vector<1x8x128xi1>
    %cst_9 = arith.constant -1.000000e+30 : f32
    %15 = vector.broadcast %cst_9 : f32 to vector<1x8x128xf32>
    %16 = arith.select %14, %9, %15 : vector<1x8x128xi1>, vector<1x8x128xf32>
    %cst_10 = arith.constant dense<0xFF800000> : vector<1x128xf32>
    %17 = vector.multi_reduction <maximumf>, %16, %cst_10 [1] : vector<1x8x128xf32> to vector<1x128xf32>
    %18 = vector.shape_cast %17 : vector<1x128xf32> to vector<1x1x128xf32>
    %19 = vector.broadcast %18 : vector<1x1x128xf32> to vector<1x8x128xf32>
    %20 = arith.cmpf oeq, %16, %19 : vector<1x8x128xf32>
    %21 = arith.extui %20 : vector<1x8x128xi1> to vector<1x8x128xi32>
    %22 = arith.sitofp %21 : vector<1x8x128xi32> to vector<1x8x128xf32>
    %cst_11 = arith.constant dense<0.000000e+00> : vector<1x128xf32>
    %23 = vector.multi_reduction <add>, %22, %cst_11 [1] : vector<1x8x128xf32> to vector<1x128xf32>
    %24 = vector.shape_cast %23 : vector<1x128xf32> to vector<1x1x128xf32>
    %cst_12 = arith.constant -1.000000e+30 : f32
    %25 = vector.broadcast %cst_12 : f32 to vector<1x8x128xf32>
    %26 = arith.select %20, %25, %16 : vector<1x8x128xi1>, vector<1x8x128xf32>
    %cst_13 = arith.constant dense<0xFF800000> : vector<1x128xf32>
    %27 = vector.multi_reduction <maximumf>, %26, %cst_13 [1] : vector<1x8x128xf32> to vector<1x128xf32>
    %28 = vector.shape_cast %27 : vector<1x128xf32> to vector<1x1x128xf32>
    %29 = vector.broadcast %28 : vector<1x1x128xf32> to vector<1x8x128xf32>
    %30 = arith.cmpf oeq, %26, %29 : vector<1x8x128xf32>
    %31 = arith.extui %30 : vector<1x8x128xi1> to vector<1x8x128xi32>
    %32 = arith.sitofp %31 : vector<1x8x128xi32> to vector<1x8x128xf32>
    %cst_14 = arith.constant dense<0.000000e+00> : vector<1x128xf32>
    %33 = vector.multi_reduction <add>, %32, %cst_14 [1] : vector<1x8x128xf32> to vector<1x128xf32>
    %34 = vector.shape_cast %33 : vector<1x128xf32> to vector<1x1x128xf32>
    %cst_15 = arith.constant -1.000000e+30 : f32
    %35 = vector.broadcast %cst_15 : f32 to vector<1x8x128xf32>
    %36 = arith.select %30, %35, %26 : vector<1x8x128xi1>, vector<1x8x128xf32>
    %cst_16 = arith.constant dense<0xFF800000> : vector<1x128xf32>
    %37 = vector.multi_reduction <maximumf>, %36, %cst_16 [1] : vector<1x8x128xf32> to vector<1x128xf32>
    %38 = vector.shape_cast %37 : vector<1x128xf32> to vector<1x1x128xf32>
    %39 = vector.broadcast %38 : vector<1x1x128xf32> to vector<1x8x128xf32>
    %40 = arith.cmpf oeq, %36, %39 : vector<1x8x128xf32>
    %41 = arith.extui %40 : vector<1x8x128xi1> to vector<1x8x128xi32>
    %42 = arith.sitofp %41 : vector<1x8x128xi32> to vector<1x8x128xf32>
    %cst_17 = arith.constant dense<0.000000e+00> : vector<1x128xf32>
    %43 = vector.multi_reduction <add>, %42, %cst_17 [1] : vector<1x8x128xf32> to vector<1x128xf32>
    %44 = vector.shape_cast %43 : vector<1x128xf32> to vector<1x1x128xf32>
    %cst_18 = arith.constant -1.000000e+30 : f32
    %45 = vector.broadcast %cst_18 : f32 to vector<1x8x128xf32>
    %46 = arith.select %40, %45, %36 : vector<1x8x128xi1>, vector<1x8x128xf32>
    %cst_19 = arith.constant dense<0xFF800000> : vector<1x128xf32>
    %47 = vector.multi_reduction <maximumf>, %46, %cst_19 [1] : vector<1x8x128xf32> to vector<1x128xf32>
    %48 = vector.shape_cast %47 : vector<1x128xf32> to vector<1x1x128xf32>
    %49 = vector.broadcast %48 : vector<1x1x128xf32> to vector<1x8x128xf32>
    %50 = arith.cmpf oeq, %46, %49 : vector<1x8x128xf32>
    %51 = arith.extui %50 : vector<1x8x128xi1> to vector<1x8x128xi32>
    %52 = arith.sitofp %51 : vector<1x8x128xi32> to vector<1x8x128xf32>
    %cst_20 = arith.constant dense<0.000000e+00> : vector<1x128xf32>
    %53 = vector.multi_reduction <add>, %52, %cst_20 [1] : vector<1x8x128xf32> to vector<1x128xf32>
    %54 = vector.shape_cast %53 : vector<1x128xf32> to vector<1x1x128xf32>
    %cst_21 = arith.constant -1.000000e+30 : f32
    %55 = vector.broadcast %cst_21 : f32 to vector<1x8x128xf32>
    %56 = arith.select %50, %55, %46 : vector<1x8x128xi1>, vector<1x8x128xf32>
    %cst_22 = arith.constant dense<0xFF800000> : vector<1x128xf32>
    %57 = vector.multi_reduction <maximumf>, %56, %cst_22 [1] : vector<1x8x128xf32> to vector<1x128xf32>
    %58 = vector.shape_cast %57 : vector<1x128xf32> to vector<1x1x128xf32>
    %59 = vector.broadcast %58 : vector<1x1x128xf32> to vector<1x8x128xf32>
    %60 = arith.cmpf oeq, %56, %59 : vector<1x8x128xf32>
    %61 = arith.extui %60 : vector<1x8x128xi1> to vector<1x8x128xi32>
    %62 = arith.sitofp %61 : vector<1x8x128xi32> to vector<1x8x128xf32>
    %cst_23 = arith.constant dense<0.000000e+00> : vector<1x128xf32>
    %63 = vector.multi_reduction <add>, %62, %cst_23 [1] : vector<1x8x128xf32> to vector<1x128xf32>
    %64 = vector.shape_cast %63 : vector<1x128xf32> to vector<1x1x128xf32>
    %cst_24 = arith.constant -1.000000e+30 : f32
    %65 = vector.broadcast %cst_24 : f32 to vector<1x8x128xf32>
    %66 = arith.select %60, %65, %56 : vector<1x8x128xi1>, vector<1x8x128xf32>
    %cst_25 = arith.constant dense<0xFF800000> : vector<1x128xf32>
    %67 = vector.multi_reduction <maximumf>, %66, %cst_25 [1] : vector<1x8x128xf32> to vector<1x128xf32>
    %68 = vector.shape_cast %67 : vector<1x128xf32> to vector<1x1x128xf32>
    %69 = vector.broadcast %68 : vector<1x1x128xf32> to vector<1x8x128xf32>
    %70 = arith.cmpf oeq, %66, %69 : vector<1x8x128xf32>
    %71 = arith.extui %70 : vector<1x8x128xi1> to vector<1x8x128xi32>
    %72 = arith.sitofp %71 : vector<1x8x128xi32> to vector<1x8x128xf32>
    %cst_26 = arith.constant dense<0.000000e+00> : vector<1x128xf32>
    %73 = vector.multi_reduction <add>, %72, %cst_26 [1] : vector<1x8x128xf32> to vector<1x128xf32>
    %74 = vector.shape_cast %73 : vector<1x128xf32> to vector<1x1x128xf32>
    %cst_27 = arith.constant -1.000000e+30 : f32
    %75 = vector.broadcast %cst_27 : f32 to vector<1x8x128xf32>
    %76 = arith.select %70, %75, %66 : vector<1x8x128xi1>, vector<1x8x128xf32>
    %cst_28 = arith.constant dense<0xFF800000> : vector<1x128xf32>
    %77 = vector.multi_reduction <maximumf>, %76, %cst_28 [1] : vector<1x8x128xf32> to vector<1x128xf32>
    %78 = vector.shape_cast %77 : vector<1x128xf32> to vector<1x1x128xf32>
    %79 = vector.broadcast %78 : vector<1x1x128xf32> to vector<1x8x128xf32>
    %80 = arith.cmpf oeq, %76, %79 : vector<1x8x128xf32>
    %81 = arith.extui %80 : vector<1x8x128xi1> to vector<1x8x128xi32>
    %82 = arith.sitofp %81 : vector<1x8x128xi32> to vector<1x8x128xf32>
    %cst_29 = arith.constant dense<0.000000e+00> : vector<1x128xf32>
    %83 = vector.multi_reduction <add>, %82, %cst_29 [1] : vector<1x8x128xf32> to vector<1x128xf32>
    %84 = vector.shape_cast %83 : vector<1x128xf32> to vector<1x1x128xf32>
    %cst_30 = arith.constant -1.000000e+30 : f32
    %85 = vector.broadcast %cst_30 : f32 to vector<1x8x128xf32>
    %86 = arith.select %80, %85, %76 : vector<1x8x128xi1>, vector<1x8x128xf32>
    %cst_31 = arith.constant dense<0xFF800000> : vector<1x128xf32>
    %87 = vector.multi_reduction <maximumf>, %86, %cst_31 [1] : vector<1x8x128xf32> to vector<1x128xf32>
    %88 = vector.shape_cast %87 : vector<1x128xf32> to vector<1x1x128xf32>
    %89 = vector.broadcast %88 : vector<1x1x128xf32> to vector<1x8x128xf32>
    %90 = arith.cmpf oeq, %86, %89 : vector<1x8x128xf32>
    %91 = arith.extui %90 : vector<1x8x128xi1> to vector<1x8x128xi32>
    %92 = arith.sitofp %91 : vector<1x8x128xi32> to vector<1x8x128xf32>
    %cst_32 = arith.constant dense<0.000000e+00> : vector<1x128xf32>
    %93 = vector.multi_reduction <add>, %92, %cst_32 [1] : vector<1x8x128xf32> to vector<1x128xf32>
    %94 = vector.shape_cast %93 : vector<1x128xf32> to vector<1x1x128xf32>
    %cst_33 = arith.constant -1.000000e+30 : f32
    %95 = vector.broadcast %cst_33 : f32 to vector<1x8x128xf32>
    %96 = arith.select %90, %95, %86 : vector<1x8x128xi1>, vector<1x8x128xf32>
    %cst_34 = arith.constant dense<0xFF800000> : vector<1x128xf32>
    %97 = vector.multi_reduction <maximumf>, %96, %cst_34 [1] : vector<1x8x128xf32> to vector<1x128xf32>
    %98 = vector.shape_cast %97 : vector<1x128xf32> to vector<1x1x128xf32>
    %99 = vector.broadcast %98 : vector<1x1x128xf32> to vector<1x8x128xf32>
    %100 = arith.cmpf oeq, %96, %99 : vector<1x8x128xf32>
    %101 = arith.extui %100 : vector<1x8x128xi1> to vector<1x8x128xi32>
    %102 = arith.sitofp %101 : vector<1x8x128xi32> to vector<1x8x128xf32>
    %cst_35 = arith.constant dense<0.000000e+00> : vector<1x128xf32>
    %103 = vector.multi_reduction <add>, %102, %cst_35 [1] : vector<1x8x128xf32> to vector<1x128xf32>
    %104 = vector.shape_cast %103 : vector<1x128xf32> to vector<1x1x128xf32>
    %cst_36 = arith.constant -1.000000e+30 : f32
    %105 = vector.broadcast %cst_36 : f32 to vector<1x8x128xf32>
    %106 = arith.select %100, %105, %96 : vector<1x8x128xi1>, vector<1x8x128xf32>
    %cst_37 = arith.constant dense<0xFF800000> : vector<1x128xf32>
    %107 = vector.multi_reduction <maximumf>, %106, %cst_37 [1] : vector<1x8x128xf32> to vector<1x128xf32>
    %108 = vector.shape_cast %107 : vector<1x128xf32> to vector<1x1x128xf32>
    %109 = vector.broadcast %108 : vector<1x1x128xf32> to vector<1x8x128xf32>
    %110 = arith.cmpf oeq, %106, %109 : vector<1x8x128xf32>
    %111 = arith.extui %110 : vector<1x8x128xi1> to vector<1x8x128xi32>
    %112 = arith.sitofp %111 : vector<1x8x128xi32> to vector<1x8x128xf32>
    %cst_38 = arith.constant dense<0.000000e+00> : vector<1x128xf32>
    %113 = vector.multi_reduction <add>, %112, %cst_38 [1] : vector<1x8x128xf32> to vector<1x128xf32>
    %114 = vector.shape_cast %113 : vector<1x128xf32> to vector<1x1x128xf32>
    %cst_39 = arith.constant -1.000000e+30 : f32
    %115 = vector.broadcast %cst_39 : f32 to vector<1x8x128xf32>
    %116 = arith.select %110, %115, %106 : vector<1x8x128xi1>, vector<1x8x128xf32>
    %cst_40 = arith.constant dense<0xFF800000> : vector<1x128xf32>
    %117 = vector.multi_reduction <maximumf>, %116, %cst_40 [1] : vector<1x8x128xf32> to vector<1x128xf32>
    %118 = vector.shape_cast %117 : vector<1x128xf32> to vector<1x1x128xf32>
    %119 = vector.broadcast %118 : vector<1x1x128xf32> to vector<1x8x128xf32>
    %120 = arith.cmpf oeq, %116, %119 : vector<1x8x128xf32>
    %121 = arith.extui %120 : vector<1x8x128xi1> to vector<1x8x128xi32>
    %122 = arith.sitofp %121 : vector<1x8x128xi32> to vector<1x8x128xf32>
    %cst_41 = arith.constant dense<0.000000e+00> : vector<1x128xf32>
    %123 = vector.multi_reduction <add>, %122, %cst_41 [1] : vector<1x8x128xf32> to vector<1x128xf32>
    %124 = vector.shape_cast %123 : vector<1x128xf32> to vector<1x1x128xf32>
    %cst_42 = arith.constant -1.000000e+30 : f32
    %125 = vector.broadcast %cst_42 : f32 to vector<1x8x128xf32>
    %126 = arith.select %120, %125, %116 : vector<1x8x128xi1>, vector<1x8x128xf32>
    %cst_43 = arith.constant dense<0xFF800000> : vector<1x128xf32>
    %127 = vector.multi_reduction <maximumf>, %126, %cst_43 [1] : vector<1x8x128xf32> to vector<1x128xf32>
    %128 = vector.shape_cast %127 : vector<1x128xf32> to vector<1x1x128xf32>
    %129 = vector.broadcast %128 : vector<1x1x128xf32> to vector<1x8x128xf32>
    %130 = arith.cmpf oeq, %126, %129 : vector<1x8x128xf32>
    %131 = arith.extui %130 : vector<1x8x128xi1> to vector<1x8x128xi32>
    %132 = arith.sitofp %131 : vector<1x8x128xi32> to vector<1x8x128xf32>
    %cst_44 = arith.constant dense<0.000000e+00> : vector<1x128xf32>
    %133 = vector.multi_reduction <add>, %132, %cst_44 [1] : vector<1x8x128xf32> to vector<1x128xf32>
    %134 = vector.shape_cast %133 : vector<1x128xf32> to vector<1x1x128xf32>
    %cst_45 = arith.constant -1.000000e+30 : f32
    %135 = vector.broadcast %cst_45 : f32 to vector<1x8x128xf32>
    %136 = arith.select %130, %135, %126 : vector<1x8x128xi1>, vector<1x8x128xf32>
    %cst_46 = arith.constant dense<0xFF800000> : vector<1x128xf32>
    %137 = vector.multi_reduction <maximumf>, %136, %cst_46 [1] : vector<1x8x128xf32> to vector<1x128xf32>
    %138 = vector.shape_cast %137 : vector<1x128xf32> to vector<1x1x128xf32>
    %139 = vector.broadcast %138 : vector<1x1x128xf32> to vector<1x8x128xf32>
    %140 = arith.cmpf oeq, %136, %139 : vector<1x8x128xf32>
    %141 = arith.extui %140 : vector<1x8x128xi1> to vector<1x8x128xi32>
    %142 = arith.sitofp %141 : vector<1x8x128xi32> to vector<1x8x128xf32>
    %cst_47 = arith.constant dense<0.000000e+00> : vector<1x128xf32>
    %143 = vector.multi_reduction <add>, %142, %cst_47 [1] : vector<1x8x128xf32> to vector<1x128xf32>
    %144 = vector.shape_cast %143 : vector<1x128xf32> to vector<1x1x128xf32>
    %cst_48 = arith.constant -1.000000e+30 : f32
    %145 = vector.broadcast %cst_48 : f32 to vector<1x8x128xf32>
    %146 = arith.select %140, %145, %136 : vector<1x8x128xi1>, vector<1x8x128xf32>
    %cst_49 = arith.constant dense<0xFF800000> : vector<1x128xf32>
    %147 = vector.multi_reduction <maximumf>, %146, %cst_49 [1] : vector<1x8x128xf32> to vector<1x128xf32>
    %148 = vector.shape_cast %147 : vector<1x128xf32> to vector<1x1x128xf32>
    %149 = vector.broadcast %148 : vector<1x1x128xf32> to vector<1x8x128xf32>
    %150 = arith.cmpf oeq, %146, %149 : vector<1x8x128xf32>
    %151 = arith.extui %150 : vector<1x8x128xi1> to vector<1x8x128xi32>
    %152 = arith.sitofp %151 : vector<1x8x128xi32> to vector<1x8x128xf32>
    %cst_50 = arith.constant dense<0.000000e+00> : vector<1x128xf32>
    %153 = vector.multi_reduction <add>, %152, %cst_50 [1] : vector<1x8x128xf32> to vector<1x128xf32>
    %154 = vector.shape_cast %153 : vector<1x128xf32> to vector<1x1x128xf32>
    %cst_51 = arith.constant -1.000000e+30 : f32
    %155 = vector.broadcast %cst_51 : f32 to vector<1x8x128xf32>
    %156 = arith.select %150, %155, %146 : vector<1x8x128xi1>, vector<1x8x128xf32>
    %cst_52 = arith.constant dense<0xFF800000> : vector<1x128xf32>
    %157 = vector.multi_reduction <maximumf>, %156, %cst_52 [1] : vector<1x8x128xf32> to vector<1x128xf32>
    %158 = vector.shape_cast %157 : vector<1x128xf32> to vector<1x1x128xf32>
    %159 = vector.broadcast %158 : vector<1x1x128xf32> to vector<1x8x128xf32>
    %160 = arith.cmpf oeq, %156, %159 : vector<1x8x128xf32>
    %161 = arith.extui %160 : vector<1x8x128xi1> to vector<1x8x128xi32>
    %162 = arith.sitofp %161 : vector<1x8x128xi32> to vector<1x8x128xf32>
    %cst_53 = arith.constant dense<0.000000e+00> : vector<1x128xf32>
    %163 = vector.multi_reduction <add>, %162, %cst_53 [1] : vector<1x8x128xf32> to vector<1x128xf32>
    %164 = vector.shape_cast %163 : vector<1x128xf32> to vector<1x1x128xf32>
    %cst_54 = arith.constant -1.000000e+30 : f32
    %165 = vector.broadcast %cst_54 : f32 to vector<1x8x128xf32>
    %166 = arith.select %160, %165, %156 : vector<1x8x128xi1>, vector<1x8x128xf32>
    %cst_55 = arith.constant dense<0xFF800000> : vector<1x128xf32>
    %167 = vector.multi_reduction <maximumf>, %166, %cst_55 [1] : vector<1x8x128xf32> to vector<1x128xf32>
    %168 = vector.shape_cast %167 : vector<1x128xf32> to vector<1x1x128xf32>
    %169 = vector.broadcast %168 : vector<1x1x128xf32> to vector<1x8x128xf32>
    %170 = arith.cmpf oeq, %166, %169 : vector<1x8x128xf32>
    %171 = arith.extui %170 : vector<1x8x128xi1> to vector<1x8x128xi32>
    %172 = arith.sitofp %171 : vector<1x8x128xi32> to vector<1x8x128xf32>
    %cst_56 = arith.constant dense<0.000000e+00> : vector<1x128xf32>
    %173 = vector.multi_reduction <add>, %172, %cst_56 [1] : vector<1x8x128xf32> to vector<1x128xf32>
    %174 = vector.shape_cast %173 : vector<1x128xf32> to vector<1x1x128xf32>
    %175 = tpu.concatenate %18, %28, %38, %48, %58, %68, %78, %88, %98, %108, %118, %128, %138, %148, %158, %168 in 1 : vector<1x1x128xf32>, vector<1x1x128xf32>, vector<1x1x128xf32>, vector<1x1x128xf32>, vector<1x1x128xf32>, vector<1x1x128xf32>, vector<1x1x128xf32>, vector<1x1x128xf32>, vector<1x1x128xf32>, vector<1x1x128xf32>, vector<1x1x128xf32>, vector<1x1x128xf32>, vector<1x1x128xf32>, vector<1x1x128xf32>, vector<1x1x128xf32>, vector<1x1x128xf32> -> vector<1x16x128xf32>
    %176 = tpu.concatenate %24, %34, %44, %54, %64, %74, %84, %94, %104, %114, %124, %134, %144, %154, %164, %174 in 1 : vector<1x1x128xf32>, vector<1x1x128xf32>, vector<1x1x128xf32>, vector<1x1x128xf32>, vector<1x1x128xf32>, vector<1x1x128xf32>, vector<1x1x128xf32>, vector<1x1x128xf32>, vector<1x1x128xf32>, vector<1x1x128xf32>, vector<1x1x128xf32>, vector<1x1x128xf32>, vector<1x1x128xf32>, vector<1x1x128xf32>, vector<1x1x128xf32>, vector<1x1x128xf32> -> vector<1x16x128xf32>
    %cst_57 = arith.constant dense<0xFF800000> : vector<1xf32>
    %177 = vector.multi_reduction <maximumf>, %175, %cst_57 [1, 2] : vector<1x16x128xf32> to vector<1xf32>
    %178 = vector.shape_cast %177 : vector<1xf32> to vector<1x1x1xf32>
    %cst_58 = arith.constant 0.000000e+00 : f32
    %179 = vector.broadcast %cst_58 : f32 to vector<1x1x1xf32>
    %cst_59 = arith.constant 1.600000e+01 : f32
    %180 = vector.broadcast %cst_59 : f32 to vector<1x1x1xf32>
    %181 = arith.addf %179, %180 : vector<1x1x1xf32>
    %c0_i32 = arith.constant 0 : i32
    %182 = vector.broadcast %178 : vector<1x1x1xf32> to vector<1x16x128xf32>
    %183 = arith.cmpf oeq, %175, %182 : vector<1x16x128xf32>
    %184 = vector.broadcast %178 : vector<1x1x1xf32> to vector<1x16x128xf32>
    %185 = arith.cmpf olt, %175, %184 : vector<1x16x128xf32>
    %cst_60 = arith.constant 0.000000e+00 : f32
    %186 = vector.broadcast %cst_60 : f32 to vector<1x16x128xf32>
    %187 = arith.select %183, %176, %186 : vector<1x16x128xi1>, vector<1x16x128xf32>
    %cst_61 = arith.constant dense<0.000000e+00> : vector<1xf32>
    %188 = vector.multi_reduction <add>, %187, %cst_61 [1, 2] : vector<1x16x128xf32> to vector<1xf32>
    %189 = vector.shape_cast %188 : vector<1xf32> to vector<1x1x1xf32>
    %190 = arith.minimumf %189, %181 : vector<1x1x1xf32>
    %cst_62 = arith.constant -1.000000e+29 : f32
    %191 = vector.broadcast %cst_62 : f32 to vector<1x1x1xf32>
    %192 = arith.cmpf ogt, %178, %191 : vector<1x1x1xf32>
    %cst_63 = arith.constant 0.000000e+00 : f32
    %193 = vector.broadcast %cst_63 : f32 to vector<1x1x1xf32>
    %194 = arith.select %192, %190, %193 : vector<1x1x1xi1>, vector<1x1x1xf32>
    %195 = arith.mulf %194, %178 : vector<1x1x1xf32>
    %196 = arith.addf %179, %195 : vector<1x1x1xf32>
    %197 = arith.subf %181, %194 : vector<1x1x1xf32>
    %cst_64 = arith.constant -1.000000e+30 : f32
    %198 = vector.broadcast %cst_64 : f32 to vector<1x16x128xf32>
    %199 = arith.select %185, %175, %198 : vector<1x16x128xi1>, vector<1x16x128xf32>
    %cst_65 = arith.constant dense<0xFF800000> : vector<1xf32>
    %200 = vector.multi_reduction <maximumf>, %199, %cst_65 [1, 2] : vector<1x16x128xf32> to vector<1xf32>
    %201 = vector.shape_cast %200 : vector<1xf32> to vector<1x1x1xf32>
    %c1_i32 = arith.constant 1 : i32
    %202 = vector.broadcast %201 : vector<1x1x1xf32> to vector<1x16x128xf32>
    %203 = arith.cmpf oeq, %175, %202 : vector<1x16x128xf32>
    %204 = vector.broadcast %201 : vector<1x1x1xf32> to vector<1x16x128xf32>
    %205 = arith.cmpf olt, %175, %204 : vector<1x16x128xf32>
    %cst_66 = arith.constant 0.000000e+00 : f32
    %206 = vector.broadcast %cst_66 : f32 to vector<1x16x128xf32>
    %207 = arith.select %203, %176, %206 : vector<1x16x128xi1>, vector<1x16x128xf32>
    %cst_67 = arith.constant dense<0.000000e+00> : vector<1xf32>
    %208 = vector.multi_reduction <add>, %207, %cst_67 [1, 2] : vector<1x16x128xf32> to vector<1xf32>
    %209 = vector.shape_cast %208 : vector<1xf32> to vector<1x1x1xf32>
    %210 = arith.minimumf %209, %197 : vector<1x1x1xf32>
    %cst_68 = arith.constant -1.000000e+29 : f32
    %211 = vector.broadcast %cst_68 : f32 to vector<1x1x1xf32>
    %212 = arith.cmpf ogt, %201, %211 : vector<1x1x1xf32>
    %cst_69 = arith.constant 0.000000e+00 : f32
    %213 = vector.broadcast %cst_69 : f32 to vector<1x1x1xf32>
    %214 = arith.select %212, %210, %213 : vector<1x1x1xi1>, vector<1x1x1xf32>
    %215 = arith.mulf %214, %201 : vector<1x1x1xf32>
    %216 = arith.addf %196, %215 : vector<1x1x1xf32>
    %217 = arith.subf %197, %214 : vector<1x1x1xf32>
    %cst_70 = arith.constant -1.000000e+30 : f32
    %218 = vector.broadcast %cst_70 : f32 to vector<1x16x128xf32>
    %219 = arith.select %205, %175, %218 : vector<1x16x128xi1>, vector<1x16x128xf32>
    %cst_71 = arith.constant dense<0xFF800000> : vector<1xf32>
    %220 = vector.multi_reduction <maximumf>, %219, %cst_71 [1, 2] : vector<1x16x128xf32> to vector<1xf32>
    %221 = vector.shape_cast %220 : vector<1xf32> to vector<1x1x1xf32>
    %c2_i32 = arith.constant 2 : i32
    %222 = vector.broadcast %221 : vector<1x1x1xf32> to vector<1x16x128xf32>
    %223 = arith.cmpf oeq, %175, %222 : vector<1x16x128xf32>
    %224 = vector.broadcast %221 : vector<1x1x1xf32> to vector<1x16x128xf32>
    %225 = arith.cmpf olt, %175, %224 : vector<1x16x128xf32>
    %cst_72 = arith.constant 0.000000e+00 : f32
    %226 = vector.broadcast %cst_72 : f32 to vector<1x16x128xf32>
    %227 = arith.select %223, %176, %226 : vector<1x16x128xi1>, vector<1x16x128xf32>
    %cst_73 = arith.constant dense<0.000000e+00> : vector<1xf32>
    %228 = vector.multi_reduction <add>, %227, %cst_73 [1, 2] : vector<1x16x128xf32> to vector<1xf32>
    %229 = vector.shape_cast %228 : vector<1xf32> to vector<1x1x1xf32>
    %230 = arith.minimumf %229, %217 : vector<1x1x1xf32>
    %cst_74 = arith.constant -1.000000e+29 : f32
    %231 = vector.broadcast %cst_74 : f32 to vector<1x1x1xf32>
    %232 = arith.cmpf ogt, %221, %231 : vector<1x1x1xf32>
    %cst_75 = arith.constant 0.000000e+00 : f32
    %233 = vector.broadcast %cst_75 : f32 to vector<1x1x1xf32>
    %234 = arith.select %232, %230, %233 : vector<1x1x1xi1>, vector<1x1x1xf32>
    %235 = arith.mulf %234, %221 : vector<1x1x1xf32>
    %236 = arith.addf %216, %235 : vector<1x1x1xf32>
    %237 = arith.subf %217, %234 : vector<1x1x1xf32>
    %cst_76 = arith.constant -1.000000e+30 : f32
    %238 = vector.broadcast %cst_76 : f32 to vector<1x16x128xf32>
    %239 = arith.select %225, %175, %238 : vector<1x16x128xi1>, vector<1x16x128xf32>
    %cst_77 = arith.constant dense<0xFF800000> : vector<1xf32>
    %240 = vector.multi_reduction <maximumf>, %239, %cst_77 [1, 2] : vector<1x16x128xf32> to vector<1xf32>
    %241 = vector.shape_cast %240 : vector<1xf32> to vector<1x1x1xf32>
    %c3_i32 = arith.constant 3 : i32
    %242 = vector.broadcast %241 : vector<1x1x1xf32> to vector<1x16x128xf32>
    %243 = arith.cmpf oeq, %175, %242 : vector<1x16x128xf32>
    %244 = vector.broadcast %241 : vector<1x1x1xf32> to vector<1x16x128xf32>
    %245 = arith.cmpf olt, %175, %244 : vector<1x16x128xf32>
    %cst_78 = arith.constant 0.000000e+00 : f32
    %246 = vector.broadcast %cst_78 : f32 to vector<1x16x128xf32>
    %247 = arith.select %243, %176, %246 : vector<1x16x128xi1>, vector<1x16x128xf32>
    %cst_79 = arith.constant dense<0.000000e+00> : vector<1xf32>
    %248 = vector.multi_reduction <add>, %247, %cst_79 [1, 2] : vector<1x16x128xf32> to vector<1xf32>
    %249 = vector.shape_cast %248 : vector<1xf32> to vector<1x1x1xf32>
    %250 = arith.minimumf %249, %237 : vector<1x1x1xf32>
    %cst_80 = arith.constant -1.000000e+29 : f32
    %251 = vector.broadcast %cst_80 : f32 to vector<1x1x1xf32>
    %252 = arith.cmpf ogt, %241, %251 : vector<1x1x1xf32>
    %cst_81 = arith.constant 0.000000e+00 : f32
    %253 = vector.broadcast %cst_81 : f32 to vector<1x1x1xf32>
    %254 = arith.select %252, %250, %253 : vector<1x1x1xi1>, vector<1x1x1xf32>
    %255 = arith.mulf %254, %241 : vector<1x1x1xf32>
    %256 = arith.addf %236, %255 : vector<1x1x1xf32>
    %257 = arith.subf %237, %254 : vector<1x1x1xf32>
    %cst_82 = arith.constant -1.000000e+30 : f32
    %258 = vector.broadcast %cst_82 : f32 to vector<1x16x128xf32>
    %259 = arith.select %245, %175, %258 : vector<1x16x128xi1>, vector<1x16x128xf32>
    %cst_83 = arith.constant dense<0xFF800000> : vector<1xf32>
    %260 = vector.multi_reduction <maximumf>, %259, %cst_83 [1, 2] : vector<1x16x128xf32> to vector<1xf32>
    %261 = vector.shape_cast %260 : vector<1xf32> to vector<1x1x1xf32>
    %c4_i32 = arith.constant 4 : i32
    %262 = vector.broadcast %261 : vector<1x1x1xf32> to vector<1x16x128xf32>
    %263 = arith.cmpf oeq, %175, %262 : vector<1x16x128xf32>
    %264 = vector.broadcast %261 : vector<1x1x1xf32> to vector<1x16x128xf32>
    %265 = arith.cmpf olt, %175, %264 : vector<1x16x128xf32>
    %cst_84 = arith.constant 0.000000e+00 : f32
    %266 = vector.broadcast %cst_84 : f32 to vector<1x16x128xf32>
    %267 = arith.select %263, %176, %266 : vector<1x16x128xi1>, vector<1x16x128xf32>
    %cst_85 = arith.constant dense<0.000000e+00> : vector<1xf32>
    %268 = vector.multi_reduction <add>, %267, %cst_85 [1, 2] : vector<1x16x128xf32> to vector<1xf32>
    %269 = vector.shape_cast %268 : vector<1xf32> to vector<1x1x1xf32>
    %270 = arith.minimumf %269, %257 : vector<1x1x1xf32>
    %cst_86 = arith.constant -1.000000e+29 : f32
    %271 = vector.broadcast %cst_86 : f32 to vector<1x1x1xf32>
    %272 = arith.cmpf ogt, %261, %271 : vector<1x1x1xf32>
    %cst_87 = arith.constant 0.000000e+00 : f32
    %273 = vector.broadcast %cst_87 : f32 to vector<1x1x1xf32>
    %274 = arith.select %272, %270, %273 : vector<1x1x1xi1>, vector<1x1x1xf32>
    %275 = arith.mulf %274, %261 : vector<1x1x1xf32>
    %276 = arith.addf %256, %275 : vector<1x1x1xf32>
    %277 = arith.subf %257, %274 : vector<1x1x1xf32>
    %cst_88 = arith.constant -1.000000e+30 : f32
    %278 = vector.broadcast %cst_88 : f32 to vector<1x16x128xf32>
    %279 = arith.select %265, %175, %278 : vector<1x16x128xi1>, vector<1x16x128xf32>
    %cst_89 = arith.constant dense<0xFF800000> : vector<1xf32>
    %280 = vector.multi_reduction <maximumf>, %279, %cst_89 [1, 2] : vector<1x16x128xf32> to vector<1xf32>
    %281 = vector.shape_cast %280 : vector<1xf32> to vector<1x1x1xf32>
    %c5_i32 = arith.constant 5 : i32
    %282 = vector.broadcast %281 : vector<1x1x1xf32> to vector<1x16x128xf32>
    %283 = arith.cmpf oeq, %175, %282 : vector<1x16x128xf32>
    %284 = vector.broadcast %281 : vector<1x1x1xf32> to vector<1x16x128xf32>
    %285 = arith.cmpf olt, %175, %284 : vector<1x16x128xf32>
    %cst_90 = arith.constant 0.000000e+00 : f32
    %286 = vector.broadcast %cst_90 : f32 to vector<1x16x128xf32>
    %287 = arith.select %283, %176, %286 : vector<1x16x128xi1>, vector<1x16x128xf32>
    %cst_91 = arith.constant dense<0.000000e+00> : vector<1xf32>
    %288 = vector.multi_reduction <add>, %287, %cst_91 [1, 2] : vector<1x16x128xf32> to vector<1xf32>
    %289 = vector.shape_cast %288 : vector<1xf32> to vector<1x1x1xf32>
    %290 = arith.minimumf %289, %277 : vector<1x1x1xf32>
    %cst_92 = arith.constant -1.000000e+29 : f32
    %291 = vector.broadcast %cst_92 : f32 to vector<1x1x1xf32>
    %292 = arith.cmpf ogt, %281, %291 : vector<1x1x1xf32>
    %cst_93 = arith.constant 0.000000e+00 : f32
    %293 = vector.broadcast %cst_93 : f32 to vector<1x1x1xf32>
    %294 = arith.select %292, %290, %293 : vector<1x1x1xi1>, vector<1x1x1xf32>
    %295 = arith.mulf %294, %281 : vector<1x1x1xf32>
    %296 = arith.addf %276, %295 : vector<1x1x1xf32>
    %297 = arith.subf %277, %294 : vector<1x1x1xf32>
    %cst_94 = arith.constant -1.000000e+30 : f32
    %298 = vector.broadcast %cst_94 : f32 to vector<1x16x128xf32>
    %299 = arith.select %285, %175, %298 : vector<1x16x128xi1>, vector<1x16x128xf32>
    %cst_95 = arith.constant dense<0xFF800000> : vector<1xf32>
    %300 = vector.multi_reduction <maximumf>, %299, %cst_95 [1, 2] : vector<1x16x128xf32> to vector<1xf32>
    %301 = vector.shape_cast %300 : vector<1xf32> to vector<1x1x1xf32>
    %c6_i32 = arith.constant 6 : i32
    %302 = vector.broadcast %301 : vector<1x1x1xf32> to vector<1x16x128xf32>
    %303 = arith.cmpf oeq, %175, %302 : vector<1x16x128xf32>
    %304 = vector.broadcast %301 : vector<1x1x1xf32> to vector<1x16x128xf32>
    %305 = arith.cmpf olt, %175, %304 : vector<1x16x128xf32>
    %cst_96 = arith.constant 0.000000e+00 : f32
    %306 = vector.broadcast %cst_96 : f32 to vector<1x16x128xf32>
    %307 = arith.select %303, %176, %306 : vector<1x16x128xi1>, vector<1x16x128xf32>
    %cst_97 = arith.constant dense<0.000000e+00> : vector<1xf32>
    %308 = vector.multi_reduction <add>, %307, %cst_97 [1, 2] : vector<1x16x128xf32> to vector<1xf32>
    %309 = vector.shape_cast %308 : vector<1xf32> to vector<1x1x1xf32>
    %310 = arith.minimumf %309, %297 : vector<1x1x1xf32>
    %cst_98 = arith.constant -1.000000e+29 : f32
    %311 = vector.broadcast %cst_98 : f32 to vector<1x1x1xf32>
    %312 = arith.cmpf ogt, %301, %311 : vector<1x1x1xf32>
    %cst_99 = arith.constant 0.000000e+00 : f32
    %313 = vector.broadcast %cst_99 : f32 to vector<1x1x1xf32>
    %314 = arith.select %312, %310, %313 : vector<1x1x1xi1>, vector<1x1x1xf32>
    %315 = arith.mulf %314, %301 : vector<1x1x1xf32>
    %316 = arith.addf %296, %315 : vector<1x1x1xf32>
    %317 = arith.subf %297, %314 : vector<1x1x1xf32>
    %cst_100 = arith.constant -1.000000e+30 : f32
    %318 = vector.broadcast %cst_100 : f32 to vector<1x16x128xf32>
    %319 = arith.select %305, %175, %318 : vector<1x16x128xi1>, vector<1x16x128xf32>
    %cst_101 = arith.constant dense<0xFF800000> : vector<1xf32>
    %320 = vector.multi_reduction <maximumf>, %319, %cst_101 [1, 2] : vector<1x16x128xf32> to vector<1xf32>
    %321 = vector.shape_cast %320 : vector<1xf32> to vector<1x1x1xf32>
    %c7_i32 = arith.constant 7 : i32
    %322 = vector.broadcast %321 : vector<1x1x1xf32> to vector<1x16x128xf32>
    %323 = arith.cmpf oeq, %175, %322 : vector<1x16x128xf32>
    %324 = vector.broadcast %321 : vector<1x1x1xf32> to vector<1x16x128xf32>
    %325 = arith.cmpf olt, %175, %324 : vector<1x16x128xf32>
    %cst_102 = arith.constant 0.000000e+00 : f32
    %326 = vector.broadcast %cst_102 : f32 to vector<1x16x128xf32>
    %327 = arith.select %323, %176, %326 : vector<1x16x128xi1>, vector<1x16x128xf32>
    %cst_103 = arith.constant dense<0.000000e+00> : vector<1xf32>
    %328 = vector.multi_reduction <add>, %327, %cst_103 [1, 2] : vector<1x16x128xf32> to vector<1xf32>
    %329 = vector.shape_cast %328 : vector<1xf32> to vector<1x1x1xf32>
    %330 = arith.minimumf %329, %317 : vector<1x1x1xf32>
    %cst_104 = arith.constant -1.000000e+29 : f32
    %331 = vector.broadcast %cst_104 : f32 to vector<1x1x1xf32>
    %332 = arith.cmpf ogt, %321, %331 : vector<1x1x1xf32>
    %cst_105 = arith.constant 0.000000e+00 : f32
    %333 = vector.broadcast %cst_105 : f32 to vector<1x1x1xf32>
    %334 = arith.select %332, %330, %333 : vector<1x1x1xi1>, vector<1x1x1xf32>
    %335 = arith.mulf %334, %321 : vector<1x1x1xf32>
    %336 = arith.addf %316, %335 : vector<1x1x1xf32>
    %337 = arith.subf %317, %334 : vector<1x1x1xf32>
    %cst_106 = arith.constant -1.000000e+30 : f32
    %338 = vector.broadcast %cst_106 : f32 to vector<1x16x128xf32>
    %339 = arith.select %325, %175, %338 : vector<1x16x128xi1>, vector<1x16x128xf32>
    %cst_107 = arith.constant dense<0xFF800000> : vector<1xf32>
    %340 = vector.multi_reduction <maximumf>, %339, %cst_107 [1, 2] : vector<1x16x128xf32> to vector<1xf32>
    %341 = vector.shape_cast %340 : vector<1xf32> to vector<1x1x1xf32>
    %c8_i32 = arith.constant 8 : i32
    %342 = vector.broadcast %341 : vector<1x1x1xf32> to vector<1x16x128xf32>
    %343 = arith.cmpf oeq, %175, %342 : vector<1x16x128xf32>
    %344 = vector.broadcast %341 : vector<1x1x1xf32> to vector<1x16x128xf32>
    %345 = arith.cmpf olt, %175, %344 : vector<1x16x128xf32>
    %cst_108 = arith.constant 0.000000e+00 : f32
    %346 = vector.broadcast %cst_108 : f32 to vector<1x16x128xf32>
    %347 = arith.select %343, %176, %346 : vector<1x16x128xi1>, vector<1x16x128xf32>
    %cst_109 = arith.constant dense<0.000000e+00> : vector<1xf32>
    %348 = vector.multi_reduction <add>, %347, %cst_109 [1, 2] : vector<1x16x128xf32> to vector<1xf32>
    %349 = vector.shape_cast %348 : vector<1xf32> to vector<1x1x1xf32>
    %350 = arith.minimumf %349, %337 : vector<1x1x1xf32>
    %cst_110 = arith.constant -1.000000e+29 : f32
    %351 = vector.broadcast %cst_110 : f32 to vector<1x1x1xf32>
    %352 = arith.cmpf ogt, %341, %351 : vector<1x1x1xf32>
    %cst_111 = arith.constant 0.000000e+00 : f32
    %353 = vector.broadcast %cst_111 : f32 to vector<1x1x1xf32>
    %354 = arith.select %352, %350, %353 : vector<1x1x1xi1>, vector<1x1x1xf32>
    %355 = arith.mulf %354, %341 : vector<1x1x1xf32>
    %356 = arith.addf %336, %355 : vector<1x1x1xf32>
    %357 = arith.subf %337, %354 : vector<1x1x1xf32>
    %cst_112 = arith.constant -1.000000e+30 : f32
    %358 = vector.broadcast %cst_112 : f32 to vector<1x16x128xf32>
    %359 = arith.select %345, %175, %358 : vector<1x16x128xi1>, vector<1x16x128xf32>
    %cst_113 = arith.constant dense<0xFF800000> : vector<1xf32>
    %360 = vector.multi_reduction <maximumf>, %359, %cst_113 [1, 2] : vector<1x16x128xf32> to vector<1xf32>
    %361 = vector.shape_cast %360 : vector<1xf32> to vector<1x1x1xf32>
    %c9_i32 = arith.constant 9 : i32
    %362 = vector.broadcast %361 : vector<1x1x1xf32> to vector<1x16x128xf32>
    %363 = arith.cmpf oeq, %175, %362 : vector<1x16x128xf32>
    %364 = vector.broadcast %361 : vector<1x1x1xf32> to vector<1x16x128xf32>
    %365 = arith.cmpf olt, %175, %364 : vector<1x16x128xf32>
    %cst_114 = arith.constant 0.000000e+00 : f32
    %366 = vector.broadcast %cst_114 : f32 to vector<1x16x128xf32>
    %367 = arith.select %363, %176, %366 : vector<1x16x128xi1>, vector<1x16x128xf32>
    %cst_115 = arith.constant dense<0.000000e+00> : vector<1xf32>
    %368 = vector.multi_reduction <add>, %367, %cst_115 [1, 2] : vector<1x16x128xf32> to vector<1xf32>
    %369 = vector.shape_cast %368 : vector<1xf32> to vector<1x1x1xf32>
    %370 = arith.minimumf %369, %357 : vector<1x1x1xf32>
    %cst_116 = arith.constant -1.000000e+29 : f32
    %371 = vector.broadcast %cst_116 : f32 to vector<1x1x1xf32>
    %372 = arith.cmpf ogt, %361, %371 : vector<1x1x1xf32>
    %cst_117 = arith.constant 0.000000e+00 : f32
    %373 = vector.broadcast %cst_117 : f32 to vector<1x1x1xf32>
    %374 = arith.select %372, %370, %373 : vector<1x1x1xi1>, vector<1x1x1xf32>
    %375 = arith.mulf %374, %361 : vector<1x1x1xf32>
    %376 = arith.addf %356, %375 : vector<1x1x1xf32>
    %377 = arith.subf %357, %374 : vector<1x1x1xf32>
    %cst_118 = arith.constant -1.000000e+30 : f32
    %378 = vector.broadcast %cst_118 : f32 to vector<1x16x128xf32>
    %379 = arith.select %365, %175, %378 : vector<1x16x128xi1>, vector<1x16x128xf32>
    %cst_119 = arith.constant dense<0xFF800000> : vector<1xf32>
    %380 = vector.multi_reduction <maximumf>, %379, %cst_119 [1, 2] : vector<1x16x128xf32> to vector<1xf32>
    %381 = vector.shape_cast %380 : vector<1xf32> to vector<1x1x1xf32>
    %c10_i32 = arith.constant 10 : i32
    %382 = vector.broadcast %381 : vector<1x1x1xf32> to vector<1x16x128xf32>
    %383 = arith.cmpf oeq, %175, %382 : vector<1x16x128xf32>
    %384 = vector.broadcast %381 : vector<1x1x1xf32> to vector<1x16x128xf32>
    %385 = arith.cmpf olt, %175, %384 : vector<1x16x128xf32>
    %cst_120 = arith.constant 0.000000e+00 : f32
    %386 = vector.broadcast %cst_120 : f32 to vector<1x16x128xf32>
    %387 = arith.select %383, %176, %386 : vector<1x16x128xi1>, vector<1x16x128xf32>
    %cst_121 = arith.constant dense<0.000000e+00> : vector<1xf32>
    %388 = vector.multi_reduction <add>, %387, %cst_121 [1, 2] : vector<1x16x128xf32> to vector<1xf32>
    %389 = vector.shape_cast %388 : vector<1xf32> to vector<1x1x1xf32>
    %390 = arith.minimumf %389, %377 : vector<1x1x1xf32>
    %cst_122 = arith.constant -1.000000e+29 : f32
    %391 = vector.broadcast %cst_122 : f32 to vector<1x1x1xf32>
    %392 = arith.cmpf ogt, %381, %391 : vector<1x1x1xf32>
    %cst_123 = arith.constant 0.000000e+00 : f32
    %393 = vector.broadcast %cst_123 : f32 to vector<1x1x1xf32>
    %394 = arith.select %392, %390, %393 : vector<1x1x1xi1>, vector<1x1x1xf32>
    %395 = arith.mulf %394, %381 : vector<1x1x1xf32>
    %396 = arith.addf %376, %395 : vector<1x1x1xf32>
    %397 = arith.subf %377, %394 : vector<1x1x1xf32>
    %cst_124 = arith.constant -1.000000e+30 : f32
    %398 = vector.broadcast %cst_124 : f32 to vector<1x16x128xf32>
    %399 = arith.select %385, %175, %398 : vector<1x16x128xi1>, vector<1x16x128xf32>
    %cst_125 = arith.constant dense<0xFF800000> : vector<1xf32>
    %400 = vector.multi_reduction <maximumf>, %399, %cst_125 [1, 2] : vector<1x16x128xf32> to vector<1xf32>
    %401 = vector.shape_cast %400 : vector<1xf32> to vector<1x1x1xf32>
    %c11_i32 = arith.constant 11 : i32
    %402 = vector.broadcast %401 : vector<1x1x1xf32> to vector<1x16x128xf32>
    %403 = arith.cmpf oeq, %175, %402 : vector<1x16x128xf32>
    %404 = vector.broadcast %401 : vector<1x1x1xf32> to vector<1x16x128xf32>
    %405 = arith.cmpf olt, %175, %404 : vector<1x16x128xf32>
    %cst_126 = arith.constant 0.000000e+00 : f32
    %406 = vector.broadcast %cst_126 : f32 to vector<1x16x128xf32>
    %407 = arith.select %403, %176, %406 : vector<1x16x128xi1>, vector<1x16x128xf32>
    %cst_127 = arith.constant dense<0.000000e+00> : vector<1xf32>
    %408 = vector.multi_reduction <add>, %407, %cst_127 [1, 2] : vector<1x16x128xf32> to vector<1xf32>
    %409 = vector.shape_cast %408 : vector<1xf32> to vector<1x1x1xf32>
    %410 = arith.minimumf %409, %397 : vector<1x1x1xf32>
    %cst_128 = arith.constant -1.000000e+29 : f32
    %411 = vector.broadcast %cst_128 : f32 to vector<1x1x1xf32>
    %412 = arith.cmpf ogt, %401, %411 : vector<1x1x1xf32>
    %cst_129 = arith.constant 0.000000e+00 : f32
    %413 = vector.broadcast %cst_129 : f32 to vector<1x1x1xf32>
    %414 = arith.select %412, %410, %413 : vector<1x1x1xi1>, vector<1x1x1xf32>
    %415 = arith.mulf %414, %401 : vector<1x1x1xf32>
    %416 = arith.addf %396, %415 : vector<1x1x1xf32>
    %417 = arith.subf %397, %414 : vector<1x1x1xf32>
    %cst_130 = arith.constant -1.000000e+30 : f32
    %418 = vector.broadcast %cst_130 : f32 to vector<1x16x128xf32>
    %419 = arith.select %405, %175, %418 : vector<1x16x128xi1>, vector<1x16x128xf32>
    %cst_131 = arith.constant dense<0xFF800000> : vector<1xf32>
    %420 = vector.multi_reduction <maximumf>, %419, %cst_131 [1, 2] : vector<1x16x128xf32> to vector<1xf32>
    %421 = vector.shape_cast %420 : vector<1xf32> to vector<1x1x1xf32>
    %c12_i32 = arith.constant 12 : i32
    %422 = vector.broadcast %421 : vector<1x1x1xf32> to vector<1x16x128xf32>
    %423 = arith.cmpf oeq, %175, %422 : vector<1x16x128xf32>
    %424 = vector.broadcast %421 : vector<1x1x1xf32> to vector<1x16x128xf32>
    %425 = arith.cmpf olt, %175, %424 : vector<1x16x128xf32>
    %cst_132 = arith.constant 0.000000e+00 : f32
    %426 = vector.broadcast %cst_132 : f32 to vector<1x16x128xf32>
    %427 = arith.select %423, %176, %426 : vector<1x16x128xi1>, vector<1x16x128xf32>
    %cst_133 = arith.constant dense<0.000000e+00> : vector<1xf32>
    %428 = vector.multi_reduction <add>, %427, %cst_133 [1, 2] : vector<1x16x128xf32> to vector<1xf32>
    %429 = vector.shape_cast %428 : vector<1xf32> to vector<1x1x1xf32>
    %430 = arith.minimumf %429, %417 : vector<1x1x1xf32>
    %cst_134 = arith.constant -1.000000e+29 : f32
    %431 = vector.broadcast %cst_134 : f32 to vector<1x1x1xf32>
    %432 = arith.cmpf ogt, %421, %431 : vector<1x1x1xf32>
    %cst_135 = arith.constant 0.000000e+00 : f32
    %433 = vector.broadcast %cst_135 : f32 to vector<1x1x1xf32>
    %434 = arith.select %432, %430, %433 : vector<1x1x1xi1>, vector<1x1x1xf32>
    %435 = arith.mulf %434, %421 : vector<1x1x1xf32>
    %436 = arith.addf %416, %435 : vector<1x1x1xf32>
    %437 = arith.subf %417, %434 : vector<1x1x1xf32>
    %cst_136 = arith.constant -1.000000e+30 : f32
    %438 = vector.broadcast %cst_136 : f32 to vector<1x16x128xf32>
    %439 = arith.select %425, %175, %438 : vector<1x16x128xi1>, vector<1x16x128xf32>
    %cst_137 = arith.constant dense<0xFF800000> : vector<1xf32>
    %440 = vector.multi_reduction <maximumf>, %439, %cst_137 [1, 2] : vector<1x16x128xf32> to vector<1xf32>
    %441 = vector.shape_cast %440 : vector<1xf32> to vector<1x1x1xf32>
    %c13_i32 = arith.constant 13 : i32
    %442 = vector.broadcast %441 : vector<1x1x1xf32> to vector<1x16x128xf32>
    %443 = arith.cmpf oeq, %175, %442 : vector<1x16x128xf32>
    %444 = vector.broadcast %441 : vector<1x1x1xf32> to vector<1x16x128xf32>
    %445 = arith.cmpf olt, %175, %444 : vector<1x16x128xf32>
    %cst_138 = arith.constant 0.000000e+00 : f32
    %446 = vector.broadcast %cst_138 : f32 to vector<1x16x128xf32>
    %447 = arith.select %443, %176, %446 : vector<1x16x128xi1>, vector<1x16x128xf32>
    %cst_139 = arith.constant dense<0.000000e+00> : vector<1xf32>
    %448 = vector.multi_reduction <add>, %447, %cst_139 [1, 2] : vector<1x16x128xf32> to vector<1xf32>
    %449 = vector.shape_cast %448 : vector<1xf32> to vector<1x1x1xf32>
    %450 = arith.minimumf %449, %437 : vector<1x1x1xf32>
    %cst_140 = arith.constant -1.000000e+29 : f32
    %451 = vector.broadcast %cst_140 : f32 to vector<1x1x1xf32>
    %452 = arith.cmpf ogt, %441, %451 : vector<1x1x1xf32>
    %cst_141 = arith.constant 0.000000e+00 : f32
    %453 = vector.broadcast %cst_141 : f32 to vector<1x1x1xf32>
    %454 = arith.select %452, %450, %453 : vector<1x1x1xi1>, vector<1x1x1xf32>
    %455 = arith.mulf %454, %441 : vector<1x1x1xf32>
    %456 = arith.addf %436, %455 : vector<1x1x1xf32>
    %457 = arith.subf %437, %454 : vector<1x1x1xf32>
    %cst_142 = arith.constant -1.000000e+30 : f32
    %458 = vector.broadcast %cst_142 : f32 to vector<1x16x128xf32>
    %459 = arith.select %445, %175, %458 : vector<1x16x128xi1>, vector<1x16x128xf32>
    %cst_143 = arith.constant dense<0xFF800000> : vector<1xf32>
    %460 = vector.multi_reduction <maximumf>, %459, %cst_143 [1, 2] : vector<1x16x128xf32> to vector<1xf32>
    %461 = vector.shape_cast %460 : vector<1xf32> to vector<1x1x1xf32>
    %c14_i32 = arith.constant 14 : i32
    %462 = vector.broadcast %461 : vector<1x1x1xf32> to vector<1x16x128xf32>
    %463 = arith.cmpf oeq, %175, %462 : vector<1x16x128xf32>
    %464 = vector.broadcast %461 : vector<1x1x1xf32> to vector<1x16x128xf32>
    %465 = arith.cmpf olt, %175, %464 : vector<1x16x128xf32>
    %cst_144 = arith.constant 0.000000e+00 : f32
    %466 = vector.broadcast %cst_144 : f32 to vector<1x16x128xf32>
    %467 = arith.select %463, %176, %466 : vector<1x16x128xi1>, vector<1x16x128xf32>
    %cst_145 = arith.constant dense<0.000000e+00> : vector<1xf32>
    %468 = vector.multi_reduction <add>, %467, %cst_145 [1, 2] : vector<1x16x128xf32> to vector<1xf32>
    %469 = vector.shape_cast %468 : vector<1xf32> to vector<1x1x1xf32>
    %470 = arith.minimumf %469, %457 : vector<1x1x1xf32>
    %cst_146 = arith.constant -1.000000e+29 : f32
    %471 = vector.broadcast %cst_146 : f32 to vector<1x1x1xf32>
    %472 = arith.cmpf ogt, %461, %471 : vector<1x1x1xf32>
    %cst_147 = arith.constant 0.000000e+00 : f32
    %473 = vector.broadcast %cst_147 : f32 to vector<1x1x1xf32>
    %474 = arith.select %472, %470, %473 : vector<1x1x1xi1>, vector<1x1x1xf32>
    %475 = arith.mulf %474, %461 : vector<1x1x1xf32>
    %476 = arith.addf %456, %475 : vector<1x1x1xf32>
    %477 = arith.subf %457, %474 : vector<1x1x1xf32>
    %cst_148 = arith.constant -1.000000e+30 : f32
    %478 = vector.broadcast %cst_148 : f32 to vector<1x16x128xf32>
    %479 = arith.select %465, %175, %478 : vector<1x16x128xi1>, vector<1x16x128xf32>
    %cst_149 = arith.constant dense<0xFF800000> : vector<1xf32>
    %480 = vector.multi_reduction <maximumf>, %479, %cst_149 [1, 2] : vector<1x16x128xf32> to vector<1xf32>
    %481 = vector.shape_cast %480 : vector<1xf32> to vector<1x1x1xf32>
    %c15_i32 = arith.constant 15 : i32
    %482 = vector.broadcast %481 : vector<1x1x1xf32> to vector<1x16x128xf32>
    %483 = arith.cmpf oeq, %175, %482 : vector<1x16x128xf32>
    %484 = vector.broadcast %481 : vector<1x1x1xf32> to vector<1x16x128xf32>
    %485 = arith.cmpf olt, %175, %484 : vector<1x16x128xf32>
    %cst_150 = arith.constant 0.000000e+00 : f32
    %486 = vector.broadcast %cst_150 : f32 to vector<1x16x128xf32>
    %487 = arith.select %483, %176, %486 : vector<1x16x128xi1>, vector<1x16x128xf32>
    %cst_151 = arith.constant dense<0.000000e+00> : vector<1xf32>
    %488 = vector.multi_reduction <add>, %487, %cst_151 [1, 2] : vector<1x16x128xf32> to vector<1xf32>
    %489 = vector.shape_cast %488 : vector<1xf32> to vector<1x1x1xf32>
    %490 = arith.minimumf %489, %477 : vector<1x1x1xf32>
    %cst_152 = arith.constant -1.000000e+29 : f32
    %491 = vector.broadcast %cst_152 : f32 to vector<1x1x1xf32>
    %492 = arith.cmpf ogt, %481, %491 : vector<1x1x1xf32>
    %cst_153 = arith.constant 0.000000e+00 : f32
    %493 = vector.broadcast %cst_153 : f32 to vector<1x1x1xf32>
    %494 = arith.select %492, %490, %493 : vector<1x1x1xi1>, vector<1x1x1xf32>
    %495 = arith.mulf %494, %481 : vector<1x1x1xf32>
    %496 = arith.addf %476, %495 : vector<1x1x1xf32>
    %497 = arith.subf %477, %494 : vector<1x1x1xf32>
    %cst_154 = arith.constant -1.000000e+30 : f32
    %498 = vector.broadcast %cst_154 : f32 to vector<1x16x128xf32>
    %499 = arith.select %485, %175, %498 : vector<1x16x128xi1>, vector<1x16x128xf32>
    %cst_155 = arith.constant dense<0xFF800000> : vector<1xf32>
    %500 = vector.multi_reduction <maximumf>, %499, %cst_155 [1, 2] : vector<1x16x128xf32> to vector<1xf32>
    %501 = vector.shape_cast %500 : vector<1xf32> to vector<1x1x1xf32>
    %cst_156 = arith.constant 1.600000e+01 : f32
    %502 = vector.broadcast %cst_156 : f32 to vector<1x1x1xf32>
    %503 = arith.divf %496, %502 : vector<1x1x1xf32>
    %504 = vector.shape_cast %503 : vector<1x1x1xf32> to vector<1x1x1xf32>
    %505 = vector.broadcast %504 : vector<1x1x1xf32> to vector<1x1x128xf32>
    %c0_157 = arith.constant 0 : index
    %c0_158 = arith.constant 0 : index
    %c0_159 = arith.constant 0 : index
    %506 = vector.load %arg3[%c0_157, %c0_158, %c0_159] : memref<1x1x128xf32, #tpu.memory_space<vmem>>, vector<1x1x128xf32>
    tpu.vector_store %arg3[%c0_157, %c0_158, %c0_159], %505 {strides = array<i32>} : memref<1x1x128xf32, #tpu.memory_space<vmem>>, vector<1x1x128xf32>,
    return
  }
  func.func @transform_0(%arg0: i32) -> (i32, i32, i32) {
    %c0_i32 = arith.constant 0 : i32
    %c0_i32_0 = arith.constant 0 : i32
    %c0_i32_1 = arith.constant 0 : i32
    return %arg0, %c0_i32, %c0_i32_0 : i32, i32, i32
  }
  func.func @transform_1(%arg0: i32) -> (i32, i32, i32) {
    %c0_i32 = arith.constant 0 : i32
    %c0_i32_0 = arith.constant 0 : i32
    %c0_i32_1 = arith.constant 0 : i32
    return %arg0, %c0_i32, %c0_i32_0 : i32, i32, i32
  }
  func.func @transform_2(%arg0: i32) -> (i32, i32, i32) {
    %c0_i32 = arith.constant 0 : i32
    %c0_i32_0 = arith.constant 0 : i32
    %c0_i32_1 = arith.constant 0 : i32
    return %arg0, %c0_i32, %c0_i32_0 : i32, i32, i32
  }
}

</mosaic_0001>

<llo_original>
// kernel: tpu_custom_call.1
$region0: #{tpu_custom_call.1}
  #allocation0 [shape = 'u32[]', space=smem, size = 0x4, offset = 0x4, fixed_abs, tag = 'smem constant byte address 0x4 - core index']
  #allocation1 [shape = 'u32[144,128]{1,0:T(1,128)}', space=vmem, size = 0x12000, scoped, tag = 'internal scratch']
  %s0 = inlined_call_operand.hbm [shape: f32[2,8,128], index: 0, kind: input, shape index: {}]
  %s1 = inlined_call_operand.hbm [shape: f32[2,8,128], index: 1, kind: input, shape index: {}]
  %s2 = inlined_call_operand.hbm [shape: f32[2,1,128], index: 2, kind: output, shape index: {}]
  %s3 = sld [smem:[#allocation0]]
  $region49: #{tpu_custom_call.1} parent=0
    _
  %s5 = ssub.s32 1, %s3
  %s6 = scalar_select 0, %s5, %s3
  $region1: #{tpu_custom_call.1} parent=0
    #allocation2 [shape = 'u8[8192]{0}', space=vmem, size = 0x2000, scoped, tag = 'input window, operand 0']
    #allocation3 [shape = 's32[2]{0}', space=sflag, size = 0x8, scoped, tag = 'scoped memory for tpu_custom_call.1']
    #allocation4 [shape = 's32[2]{0}', space=sflag, size = 0x8, scoped, tag = 'scoped memory for tpu_custom_call.1']
    #allocation5 [shape = 'u8[8192]{0}', space=vmem, size = 0x2000, scoped, tag = 'input window, operand 1']
    #allocation6 [shape = 's32[2]{0}', space=sflag, size = 0x8, scoped, tag = 'scoped memory for tpu_custom_call.1']
    #allocation7 [shape = 'u8[1024]{0}', space=vmem, size = 0x400, scoped, tag = 'output window, operand 0']
    %7 = vsyncpa [#allocation3], 0
    %s8 = scalar_lea.sflag [#allocation3], 1
    %9 = vsyncpa %s8, 0
    %10 = vsyncpa [#allocation6], 0
    %s11 = scalar_lea.sflag [#allocation6], 1
    %12 = vsyncpa %s11, 0
    %13 = vsyncpa [#allocation4], 0
    %s14 = scalar_lea.sflag [#allocation4], 1
    %15 = vsyncpa %s14, 0
    loop: start=0, step=1, limit=4
    $region2: #{tpu_custom_call.1} parent=1 // loop_pre_header
      _
    $region3: #{tpu_custom_call.1} parent=1 // loop_header
      %s17 = sphi 0, %s21
      %p18 = scmp.ge.s32.totalorder %s17, 4
      %s27 = sphi 0, %s29
      %s30 = sphi 0, %s27
      %s31 = sphi 0, %s30
      %s47 = sphi 0, %s31
      %s53 = sphi 0, %s55
      %s56 = sphi 0, %s53
      %s57 = sphi 0, %s56
      %s73 = sphi 0, %s57
      %s79 = sphi 0, %s81
      %s82 = sphi 0, %s79
      %s83 = sphi 0, %s82
      %s99 = sphi 0, %s83
    $region4: #{tpu_custom_call.1} parent=1 // loop_header_branch
      %20 = sbr.rel (%p18) target = $region8
    $region5: #{tpu_custom_call.1} parent=1 // loop_body
      %s22 = ssub.s32 %s17, 1
      %s23 = ssub.s32 %s17, 2
      %s24 = sadd.s32 %s17, 1
      %s25 = ssub.s32 %s17, %s24
      %p26 = scmp.eq.s32.totalorder %s25, 0
      %s28 = sadd.s32 %s27, 1
      %s29 = scalar_select %p26, %s27, %s28
      %p32 = pneg %p26
      %p33 = scmp.eq.s32.totalorder %s17, 1
      %p34 = por %p32, %p33
      %p35 = scmp.ne.s32.totalorder %s27, %s30
      %p36 = scmp.eq.s32.totalorder %s17, 0
      %p37 = por %p35, %p36
      %p38 = scmp.ne.s32.totalorder %s27, %s30
      %p39 = scmp.eq.s32.totalorder %s22, 1
      %p40 = por %p38, %p39
      %p41 = scmp.ne.s32.totalorder %s30, %s31
      %p42 = scmp.eq.s32.totalorder %s22, 0
      %p43 = por %p41, %p42
      %p44 = scmp.ne.s32.totalorder %s30, %s31
      %p45 = scmp.eq.s32.totalorder %s23, 1
      %p46 = por %p44, %p45
      %p48 = scmp.ne.s32.totalorder %s31, %s47
      %p49 = scmp.eq.s32.totalorder %s23, 0
      %p50 = por %p48, %p49
      %s51 = ssub.s32 %s17, %s24
      %p52 = scmp.eq.s32.totalorder %s51, 0
      %s54 = sadd.s32 %s53, 1
      %s55 = scalar_select %p52, %s53, %s54
      %p58 = pneg %p52
      %p59 = scmp.eq.s32.totalorder %s17, 1
      %p60 = por %p58, %p59
      %p61 = scmp.ne.s32.totalorder %s53, %s56
      %p62 = scmp.eq.s32.totalorder %s17, 0
      %p63 = por %p61, %p62
      %p64 = scmp.ne.s32.totalorder %s53, %s56
      %p65 = scmp.eq.s32.totalorder %s22, 1
      %p66 = por %p64, %p65
      %p67 = scmp.ne.s32.totalorder %s56, %s57
      %p68 = scmp.eq.s32.totalorder %s22, 0
      %p69 = por %p67, %p68
      %p70 = scmp.ne.s32.totalorder %s56, %s57
      %p71 = scmp.eq.s32.totalorder %s23, 1
      %p72 = por %p70, %p71
      %p74 = scmp.ne.s32.totalorder %s57, %s73
      %p75 = scmp.eq.s32.totalorder %s23, 0
      %p76 = por %p74, %p75
      %s77 = ssub.s32 %s17, %s24
      %p78 = scmp.eq.s32.totalorder %s77, 0
      %s80 = sadd.s32 %s79, 1
      %s81 = scalar_select %p78, %s79, %s80
      %p84 = pneg %p78
      %p85 = scmp.eq.s32.totalorder %s17, 1
      %p86 = por %p84, %p85
      %p87 = scmp.ne.s32.totalorder %s79, %s82
      %p88 = scmp.eq.s32.totalorder %s17, 0
      %p89 = por %p87, %p88
      %p90 = scmp.ne.s32.totalorder %s79, %s82
      %p91 = scmp.eq.s32.totalorder %s22, 1
      %p92 = por %p90, %p91
      %p93 = scmp.ne.s32.totalorder %s82, %s83
      %p94 = scmp.eq.s32.totalorder %s22, 0
      %p95 = por %p93, %p94
      %p96 = scmp.ne.s32.totalorder %s82, %s83
      %p97 = scmp.eq.s32.totalorder %s23, 1
      %p98 = por %p96, %p97
      %p100 = scmp.ne.s32.totalorder %s83, %s99
      %p101 = scmp.eq.s32.totalorder %s23, 0
      %p102 = por %p100, %p101
      %p103 = scmp.le.s32.totalorder 1, %s17
      %p104 = scmp.lt.s32.totalorder %s17, 3
      %p105 = pnand %p103, %p104
      %p106 = pneg %p105
      // Predicated region
      $region9: #{tpu_custom_call.1} parent=5 // pred_check
        _
      $region10: #{tpu_custom_call.1} parent=5 // pred_check_branch
        %108 = sbr.rel (%p105) target = $region12
      $region11: #{tpu_custom_call.1} parent=5 // pred_region
        %s109 = ssub.s32 %s17, 1
      $region12: #{tpu_custom_call.1} parent=5 // pred_fallthru
        _
      %p110 = scmp.lt.s32.totalorder %s17, 2
      // Predicated region
      $region13: #{tpu_custom_call.1} parent=5 // pred_check
        %p111 = pneg %p110
      $region14: #{tpu_custom_call.1} parent=5 // pred_check_branch
        %113 = sbr.rel (%p111) target = $region16
      $region15: #{tpu_custom_call.1} parent=5 // pred_region
        // Predicated region
        $region17: #{tpu_custom_call.1} parent=15 // pred_check
          %p114 = pneg %p37
        $region18: #{tpu_custom_call.1} parent=15 // pred_check_branch
          %116 = sbr.rel (%p114) target = $region20
        $region19: #{tpu_custom_call.1} parent=15 // pred_region
          %s117 = sand.u32 %s27, 1
          %s118 = scalar_lea.sflag [#allocation3], %s117
          %s119 = sand.u32 %s27, 1
          %s120 = smul.addr %s119, 8
          %s121 = scalar_lea.vmem [#allocation2], %s120
          %s123 = ssub.s32 128, 128
          %124 = vsyncadd %s118, %s123
          %s125 = smul.addr %s17, 128
          %s126 = scalar_lea.hbm %s0, %s125
          %s128 = sshll.u32 %s121, 4
          %s129 = int_to_ptr.vmem [resolvable:$true] %s128
          %131 = dma.hbm_to_vmem [thread:$0]  %s126, 128, %s129, %s118
        $region20: #{tpu_custom_call.1} parent=15 // pred_fallthru
          _
        // Predicated region
        $region21: #{tpu_custom_call.1} parent=15 // pred_check
          %p132 = pneg %p63
        $region22: #{tpu_custom_call.1} parent=15 // pred_check_branch
          %134 = sbr.rel (%p132) target = $region24
        $region23: #{tpu_custom_call.1} parent=15 // pred_region
          %s135 = sand.u32 %s53, 1
          %s136 = scalar_lea.sflag [#allocation6], %s135
          %s137 = sand.u32 %s53, 1
          %s138 = smul.addr %s137, 8
          %s139 = scalar_lea.vmem [#allocation5], %s138
          %s141 = ssub.s32 128, 128
          %142 = vsyncadd %s136, %s141
          %s143 = smul.addr %s17, 128
          %s144 = scalar_lea.hbm %s1, %s143
          %s146 = sshll.u32 %s139, 4
          %s147 = int_to_ptr.vmem [resolvable:$true] %s146
          %149 = dma.hbm_to_vmem [thread:$0]  %s144, 128, %s147, %s136
        $region24: #{tpu_custom_call.1} parent=15 // pred_fallthru
          _
      $region16: #{tpu_custom_call.1} parent=5 // pred_fallthru
        _
      %p150 = scmp.le.s32.totalorder 1, %s17
      %p151 = scmp.lt.s32.totalorder %s17, 3
      %p152 = pnand %p150, %p151
      %p153 = pneg %p152
      // Predicated region
      $region25: #{tpu_custom_call.1} parent=5 // pred_check
        _
      $region26: #{tpu_custom_call.1} parent=5 // pred_check_branch
        %155 = sbr.rel (%p152) target = $region28
      $region27: #{tpu_custom_call.1} parent=5 // pred_region
        %s156 = ssub.s32 %s17, 1
        %s157 = sand.u32 %s30, 1
        %s158 = scalar_lea.sflag [#allocation3], %s157
        %s159 = sand.u32 %s30, 1
        %s160 = smul.addr %s159, 8
        %s161 = scalar_lea.vmem [#allocation2], %s160
        // Predicated region
        $region29: #{tpu_custom_call.1} parent=27 // pred_check
          %p162 = pneg %p43
        $region30: #{tpu_custom_call.1} parent=27 // pred_check_branch
          %164 = sbr.rel (%p162) target = $region32
        $region31: #{tpu_custom_call.1} parent=27 // pred_region
          %165 = dma.done %s158, 128
        $region32: #{tpu_custom_call.1} parent=27 // pred_fallthru
          _
        %s166 = sand.u32 %s56, 1
        %s167 = scalar_lea.sflag [#allocation6], %s166
        %s168 = sand.u32 %s56, 1
        %s169 = smul.addr %s168, 8
        %s170 = scalar_lea.vmem [#allocation5], %s169
        // Predicated region
        $region33: #{tpu_custom_call.1} parent=27 // pred_check
          %p171 = pneg %p69
        $region34: #{tpu_custom_call.1} parent=27 // pred_check_branch
          %173 = sbr.rel (%p171) target = $region36
        $region35: #{tpu_custom_call.1} parent=27 // pred_region
          %174 = dma.done %s167, 128
        $region36: #{tpu_custom_call.1} parent=27 // pred_fallthru
          _
        %s175 = sand.u32 %s30, 1
        %s176 = scalar_lea.sflag [#allocation3], %s175
        %s177 = sand.u32 %s30, 1
        %s178 = smul.addr %s177, 8
        %s179 = scalar_lea.vmem [#allocation2], %s178
        %p180 = pneg %p43
        %p181 = pneg %p40
        %s182 = sand.u32 %s56, 1
        %s183 = scalar_lea.sflag [#allocation6], %s182
        %s184 = sand.u32 %s56, 1
        %s185 = smul.addr %s184, 8
        %s186 = scalar_lea.vmem [#allocation5], %s185
        %p187 = pneg %p69
        %p188 = pneg %p66
        %p189 = pneg %p95
        %p190 = pneg %p92
        %s191 = sand.u32 %s82, 1
        %s192 = scalar_lea.sflag [#allocation4], %s191
        %s193 = sand.u32 %s82, 1
        %s194 = scalar_lea.vmem [#allocation7], %s193
        %v195 = vld [vmem:[%s161] sm:$0xff]
        %v196 = vld [vmem:[%s170] sm:$0xff]
        %vm197 = vcmp.eq.f32.partialorder %v196, 1.0
        %v198 = vsub.f32 1.0, %v195
        %v199 = vsel %vm197, %v195, %v198
        %v200 = vlog2.pop %v199
        %v201 = vmul.f32 %v200, 0.6931472
        %v202 = vsub.f32 0.0, %v201
        %vm203 = vcmp.eq.f32.partialorder %v196, 0.0
        %vm204 = vmor %vm203, %vm197
        %v205 = vsel %vm204, %v202, -1e+30
        %v206 = vrot.slane %v205, 4
        %v207 = vmax.f32 %v205, %v206
        %v208 = vrot.slane %v207, 2
        %v209 = vmax.f32 %v207, %v208
        %v210 = vrot.slane %v209, 1
        %v211 = vmax.f32 %v209, %v210
        %vm212 = vcmp.eq.f32.partialorder %v205, %v211
        %v213 = vsel %vm212, 1, 0
        %v214 = vcvt.s32.f32 %v213
        %v215 = vrot.slane %v214, 4
        %v216 = vadd.f32 %v214, %v215
        %v217 = vrot.slane %v216, 2
        %v218 = vadd.f32 %v216, %v217
        %v219 = vrot.slane %v218, 1
        %v220 = vadd.f32 %v218, %v219
        %v221 = vsel %vm212, -1e+30, %v205
        %v222 = vrot.slane %v221, 4
        %v223 = vmax.f32 %v221, %v222
        %v224 = vrot.slane %v223, 2
        %v225 = vmax.f32 %v223, %v224
        %v226 = vrot.slane %v225, 1
        %v227 = vmax.f32 %v225, %v226
        %vm228 = vcmp.eq.f32.partialorder %v221, %v227
        %v229 = vsel %vm228, 1, 0
        %v230 = vcvt.s32.f32 %v229
        %v231 = vrot.slane %v230, 4
        %v232 = vadd.f32 %v230, %v231
        %v233 = vrot.slane %v232, 2
        %v234 = vadd.f32 %v232, %v233
        %v235 = vrot.slane %v234, 1
        %v236 = vadd.f32 %v234, %v235
        %v237 = vsel %vm228, -1e+30, %v221
        %v238 = vrot.slane %v237, 4
        %v239 = vmax.f32 %v237, %v238
        %v240 = vrot.slane %v239, 2
        %v241 = vmax.f32 %v239, %v240
        %v242 = vrot.slane %v241, 1
        %v243 = vmax.f32 %v241, %v242
        %vm244 = vcmp.eq.f32.partialorder %v237, %v243
        %v245 = vsel %vm244, 1, 0
        %v246 = vcvt.s32.f32 %v245
        %v247 = vrot.slane %v246, 4
        %v248 = vadd.f32 %v246, %v247
        %v249 = vrot.slane %v248, 2
        %v250 = vadd.f32 %v248, %v249
        %v251 = vrot.slane %v250, 1
        %v252 = vadd.f32 %v250, %v251
        %v253 = vsel %vm244, -1e+30, %v237
        %v254 = vrot.slane %v253, 4
        %v255 = vmax.f32 %v253, %v254
        %v256 = vrot.slane %v255, 2
        %v257 = vmax.f32 %v255, %v256
        %v258 = vrot.slane %v257, 1
        %v259 = vmax.f32 %v257, %v258
        %vm260 = vcmp.eq.f32.partialorder %v253, %v259
        %v261 = vsel %vm260, 1, 0
        %v262 = vcvt.s32.f32 %v261
        %v263 = vrot.slane %v262, 4
        %v264 = vadd.f32 %v262, %v263
        %v265 = vrot.slane %v264, 2
        %v266 = vadd.f32 %v264, %v265
        %v267 = vrot.slane %v266, 1
        %v268 = vadd.f32 %v266, %v267
        %v269 = vsel %vm260, -1e+30, %v253
        %v270 = vrot.slane %v269, 4
        %v271 = vmax.f32 %v269, %v270
        %v272 = vrot.slane %v271, 2
        %v273 = vmax.f32 %v271, %v272
        %v274 = vrot.slane %v273, 1
        %v275 = vmax.f32 %v273, %v274
        %vm276 = vcmp.eq.f32.partialorder %v269, %v275
        %v277 = vsel %vm276, 1, 0
        %v278 = vcvt.s32.f32 %v277
        %v279 = vrot.slane %v278, 4
        %v280 = vadd.f32 %v278, %v279
        %v281 = vrot.slane %v280, 2
        %v282 = vadd.f32 %v280, %v281
        %v283 = vrot.slane %v282, 1
        %v284 = vadd.f32 %v282, %v283
        %v285 = vsel %vm276, -1e+30, %v269
        %v286 = vrot.slane %v285, 4
        %v287 = vmax.f32 %v285, %v286
        %v288 = vrot.slane %v287, 2
        %v289 = vmax.f32 %v287, %v288
        %v290 = vrot.slane %v289, 1
        %v291 = vmax.f32 %v289, %v290
        %vm292 = vcmp.eq.f32.partialorder %v285, %v291
        %v293 = vsel %vm292, 1, 0
        %v294 = vcvt.s32.f32 %v293
        %v295 = vrot.slane %v294, 4
        %v296 = vadd.f32 %v294, %v295
        %v297 = vrot.slane %v296, 2
        %v298 = vadd.f32 %v296, %v297
        %v299 = vrot.slane %v298, 1
        %v300 = vadd.f32 %v298, %v299
        %v301 = vsel %vm292, -1e+30, %v285
        %v302 = vrot.slane %v301, 4
        %v303 = vmax.f32 %v301, %v302
        %v304 = vrot.slane %v303, 2
        %v305 = vmax.f32 %v303, %v304
        %v306 = vrot.slane %v305, 1
        %v307 = vmax.f32 %v305, %v306
        %vm308 = vcmp.eq.f32.partialorder %v301, %v307
        %v309 = vsel %vm308, 1, 0
        %v310 = vcvt.s32.f32 %v309
        %v311 = vrot.slane %v310, 4
        %v312 = vadd.f32 %v310, %v311
        %v313 = vrot.slane %v312, 2
        %v314 = vadd.f32 %v312, %v313
        %v315 = vrot.slane %v314, 1
        %v316 = vadd.f32 %v314, %v315
        %v317 = vsel %vm308, -1e+30, %v301
        %v318 = vrot.slane %v317, 4
        %v319 = vmax.f32 %v317, %v318
        %v320 = vrot.slane %v319, 2
        %v321 = vmax.f32 %v319, %v320
        %v322 = vrot.slane %v321, 1
        %v323 = vmax.f32 %v321, %v322
        %vm324 = vcmp.eq.f32.partialorder %v317, %v323
        %v325 = vsel %vm324, 1, 0
        %v326 = vcvt.s32.f32 %v325
        %v327 = vrot.slane %v326, 4
        %v328 = vadd.f32 %v326, %v327
        %v329 = vrot.slane %v328, 2
        %v330 = vadd.f32 %v328, %v329
        %v331 = vrot.slane %v330, 1
        %v332 = vadd.f32 %v330, %v331
        %v333 = vsel %vm324, -1e+30, %v317
        %v334 = vrot.slane %v333, 4
        %v335 = vmax.f32 %v333, %v334
        %v336 = vrot.slane %v335, 2
        %v337 = vmax.f32 %v335, %v336
        %v338 = vrot.slane %v337, 1
        %v339 = vmax.f32 %v337, %v338
        %vm340 = vcmp.eq.f32.partialorder %v333, %v339
        %v341 = vsel %vm340, 1, 0
        %v342 = vcvt.s32.f32 %v341
        %v343 = vrot.slane %v342, 4
        %v344 = vadd.f32 %v342, %v343
        %v345 = vrot.slane %v344, 2
        %v346 = vadd.f32 %v344, %v345
        %v347 = vrot.slane %v346, 1
        %v348 = vadd.f32 %v346, %v347
        %v349 = vsel %vm340, -1e+30, %v333
        %v350 = vrot.slane %v349, 4
        %v351 = vmax.f32 %v349, %v350
        %v352 = vrot.slane %v351, 2
        %v353 = vmax.f32 %v351, %v352
        %v354 = vrot.slane %v353, 1
        %v355 = vmax.f32 %v353, %v354
        %vm356 = vcmp.eq.f32.partialorder %v349, %v355
        %v357 = vsel %vm356, 1, 0
        %v358 = vcvt.s32.f32 %v357
        %v359 = vrot.slane %v358, 4
        %v360 = vadd.f32 %v358, %v359
        %v361 = vrot.slane %v360, 2
        %v362 = vadd.f32 %v360, %v361
        %v363 = vrot.slane %v362, 1
        %v364 = vadd.f32 %v362, %v363
        %v365 = vsel %vm356, -1e+30, %v349
        %v366 = vrot.slane %v365, 4
        %v367 = vmax.f32 %v365, %v366
        %v368 = vrot.slane %v367, 2
        %v369 = vmax.f32 %v367, %v368
        %v370 = vrot.slane %v369, 1
        %v371 = vmax.f32 %v369, %v370
        %vm372 = vcmp.eq.f32.partialorder %v365, %v371
        %v373 = vsel %vm372, 1, 0
        %v374 = vcvt.s32.f32 %v373
        %v375 = vrot.slane %v374, 4
        %v376 = vadd.f32 %v374, %v375
        %v377 = vrot.slane %v376, 2
        %v378 = vadd.f32 %v376, %v377
        %v379 = vrot.slane %v378, 1
        %v380 = vadd.f32 %v378, %v379
        %v381 = vsel %vm372, -1e+30, %v365
        %v382 = vrot.slane %v381, 4
        %v383 = vmax.f32 %v381, %v382
        %v384 = vrot.slane %v383, 2
        %v385 = vmax.f32 %v383, %v384
        %v386 = vrot.slane %v385, 1
        %v387 = vmax.f32 %v385, %v386
        %vm388 = vcmp.eq.f32.partialorder %v381, %v387
        %v389 = vsel %vm388, 1, 0
        %v390 = vcvt.s32.f32 %v389
        %v391 = vrot.slane %v390, 4
        %v392 = vadd.f32 %v390, %v391
        %v393 = vrot.slane %v392, 2
        %v394 = vadd.f32 %v392, %v393
        %v395 = vrot.slane %v394, 1
        %v396 = vadd.f32 %v394, %v395
        %v397 = vsel %vm388, -1e+30, %v381
        %v398 = vrot.slane %v397, 4
        %v399 = vmax.f32 %v397, %v398
        %v400 = vrot.slane %v399, 2
        %v401 = vmax.f32 %v399, %v400
        %v402 = vrot.slane %v401, 1
        %v403 = vmax.f32 %v401, %v402
        %vm404 = vcmp.eq.f32.partialorder %v397, %v403
        %v405 = vsel %vm404, 1, 0
        %v406 = vcvt.s32.f32 %v405
        %v407 = vrot.slane %v406, 4
        %v408 = vadd.f32 %v406, %v407
        %v409 = vrot.slane %v408, 2
        %v410 = vadd.f32 %v408, %v409
        %v411 = vrot.slane %v410, 1
        %v412 = vadd.f32 %v410, %v411
        %v413 = vsel %vm404, -1e+30, %v397
        %v414 = vrot.slane %v413, 4
        %v415 = vmax.f32 %v413, %v414
        %v416 = vrot.slane %v415, 2
        %v417 = vmax.f32 %v415, %v416
        %v418 = vrot.slane %v417, 1
        %v419 = vmax.f32 %v417, %v418
        %vm420 = vcmp.eq.f32.partialorder %v413, %v419
        %v421 = vsel %vm420, 1, 0
        %v422 = vcvt.s32.f32 %v421
        %v423 = vrot.slane %v422, 4
        %v424 = vadd.f32 %v422, %v423
        %v425 = vrot.slane %v424, 2
        %v426 = vadd.f32 %v424, %v425
        %v427 = vrot.slane %v426, 1
        %v428 = vadd.f32 %v426, %v427
        %v429 = vsel %vm420, -1e+30, %v413
        %v430 = vrot.slane %v429, 4
        %v431 = vmax.f32 %v429, %v430
        %v432 = vrot.slane %v431, 2
        %v433 = vmax.f32 %v431, %v432
        %v434 = vrot.slane %v433, 1
        %v435 = vmax.f32 %v433, %v434
        %vm436 = vcmp.eq.f32.partialorder %v429, %v435
        %v437 = vsel %vm436, 1, 0
        %v438 = vcvt.s32.f32 %v437
        %v439 = vrot.slane %v438, 4
        %v440 = vadd.f32 %v438, %v439
        %v441 = vrot.slane %v440, 2
        %v442 = vadd.f32 %v440, %v441
        %v443 = vrot.slane %v442, 1
        %v444 = vadd.f32 %v442, %v443
        %v445 = vsel %vm436, -1e+30, %v429
        %v446 = vrot.slane %v445, 4
        %v447 = vmax.f32 %v445, %v446
        %v448 = vrot.slane %v447, 2
        %v449 = vmax.f32 %v447, %v448
        %v450 = vrot.slane %v449, 1
        %v451 = vmax.f32 %v449, %v450
        %vm452 = vcmp.eq.f32.partialorder %v445, %v451
        %v453 = vsel %vm452, 1, 0
        %v454 = vcvt.s32.f32 %v453
        %v455 = vrot.slane %v454, 4
        %v456 = vadd.f32 %v454, %v455
        %v457 = vrot.slane %v456, 2
        %v458 = vadd.f32 %v456, %v457
        %v459 = vrot.slane %v458, 1
        %v460 = vadd.f32 %v458, %v459
        %vm461 = vcmask 1040384
        %v462 = vsel %vm461, %v211, %v227
        %vm463 = vcmask 1041408
        %v464 = vsel %vm463, %v462, %v243
        %vm465 = vcmask 1042432
        %v466 = vsel %vm465, %v464, %v259
        %vm467 = vcmask 1043456
        %v468 = vsel %vm467, %v466, %v275
        %vm469 = vcmask 1044480
        %v470 = vsel %vm469, %v468, %v291
        %vm471 = vcmask 1045504
        %v472 = vsel %vm471, %v470, %v307
        %vm473 = vcmask 1046528
        %v474 = vsel %vm473, %v472, %v323
        %v475 = vsel %vm461, %v339, %v355
        %v476 = vsel %vm463, %v475, %v371
        %v477 = vsel %vm465, %v476, %v387
        %v478 = vsel %vm467, %v477, %v403
        %v479 = vsel %vm469, %v478, %v419
        %v480 = vsel %vm471, %v479, %v435
        %v481 = vsel %vm473, %v480, %v451
        %v482 = vsel %vm461, %v220, %v236
        %v483 = vsel %vm463, %v482, %v252
        %v484 = vsel %vm465, %v483, %v268
        %v485 = vsel %vm467, %v484, %v284
        %v486 = vsel %vm469, %v485, %v300
        %v487 = vsel %vm471, %v486, %v316
        %v488 = vsel %vm473, %v487, %v332
        %v489 = vsel %vm461, %v348, %v364
        %v490 = vsel %vm463, %v489, %v380
        %v491 = vsel %vm465, %v490, %v396
        %v492 = vsel %vm467, %v491, %v412
        %v493 = vsel %vm469, %v492, %v428
        %v494 = vsel %vm471, %v493, %v444
        %v495 = vsel %vm473, %v494, %v460
        %v496 = vmax.f32 %v474, %v481
        %497 = vmax.xlane.f32.xlu0 %v496
        %v498 = vpop.xlane.xlu0 %497
        %v499 = vrot.slane %v498, 4
        %v500 = vmax.f32 %v498, %v499
        %v501 = vrot.slane %v500, 2
        %v502 = vmax.f32 %v500, %v501
        %v503 = vrot.slane %v502, 1
        %v504 = vmax.f32 %v502, %v503
        %vm505 = vcmp.eq.f32.partialorder %v474, %v504
        %vm506 = vcmp.eq.f32.partialorder %v481, %v504
        %vm507 = vcmp.lt.f32.partialorder %v474, %v504
        %vm508 = vcmp.lt.f32.partialorder %v481, %v504
        %v509 = vsel %vm505, %v488, 0.0
        %v510 = vsel %vm506, %v495, 0.0
        %v511 = vadd.f32 %v509, %v510
        %512 = vadd.xlane.f32.xlu0 %v511
        %v513 = vpop.xlane.xlu0 %512
        %v514 = vrot.slane %v513, 4
        %v515 = vadd.f32 %v513, %v514
        %v516 = vrot.slane %v515, 2
        %v517 = vadd.f32 %v515, %v516
        %v518 = vrot.slane %v517, 1
        %v519 = vadd.f32 %v517, %v518
        %v520 = vmin.f32 %v519, 16.0
        %vm521 = vcmp.gt.f32.partialorder %v504, -1e+29
        %v522 = vsel %vm521, %v520, 0.0
        %v523 = vmul.f32 %v522, %v504
        %v524 = vadd.f32 %v523, 0.0
        %v525 = vsub.f32 16.0, %v522
        %v526 = vsel %vm507, %v474, -1e+30
        %v527 = vsel %vm508, %v481, -1e+30
        %v528 = vmax.f32 %v526, %v527
        %529 = vmax.xlane.f32.xlu0 %v528
        %v530 = vpop.xlane.xlu0 %529
        %v531 = vrot.slane %v530, 4
        %v532 = vmax.f32 %v530, %v531
        %v533 = vrot.slane %v532, 2
        %v534 = vmax.f32 %v532, %v533
        %v535 = vrot.slane %v534, 1
        %v536 = vmax.f32 %v534, %v535
        %vm537 = vcmp.eq.f32.partialorder %v474, %v536
        %vm538 = vcmp.eq.f32.partialorder %v481, %v536
        %vm539 = vcmp.lt.f32.partialorder %v474, %v536
        %vm540 = vcmp.lt.f32.partialorder %v481, %v536
        %v541 = vsel %vm537, %v488, 0.0
        %v542 = vsel %vm538, %v495, 0.0
        %v543 = vadd.f32 %v541, %v542
        %544 = vadd.xlane.f32.xlu0 %v543
        %v545 = vpop.xlane.xlu0 %544
        %v546 = vrot.slane %v545, 4
        %v547 = vadd.f32 %v545, %v546
        %v548 = vrot.slane %v547, 2
        %v549 = vadd.f32 %v547, %v548
        %v550 = vrot.slane %v549, 1
        %v551 = vadd.f32 %v549, %v550
        %v552 = vmin.f32 %v551, %v525
        %vm553 = vcmp.gt.f32.partialorder %v536, -1e+29
        %v554 = vsel %vm553, %v552, 0.0
        %v555 = vmul.f32 %v554, %v536
        %v556 = vadd.f32 %v524, %v555
        %v557 = vsub.f32 %v525, %v554
        %v558 = vsel %vm539, %v474, -1e+30
        %v559 = vsel %vm540, %v481, -1e+30
        %v560 = vmax.f32 %v558, %v559
        %561 = vmax.xlane.f32.xlu0 %v560
        %v562 = vpop.xlane.xlu0 %561
        %v563 = vrot.slane %v562, 4
        %v564 = vmax.f32 %v562, %v563
        %v565 = vrot.slane %v564, 2
        %v566 = vmax.f32 %v564, %v565
        %v567 = vrot.slane %v566, 1
        %v568 = vmax.f32 %v566, %v567
        %vm569 = vcmp.eq.f32.partialorder %v474, %v568
        %vm570 = vcmp.eq.f32.partialorder %v481, %v568
        %vm571 = vcmp.lt.f32.partialorder %v474, %v568
        %vm572 = vcmp.lt.f32.partialorder %v481, %v568
        %v573 = vsel %vm569, %v488, 0.0
        %v574 = vsel %vm570, %v495, 0.0
        %v575 = vadd.f32 %v573, %v574
        %576 = vadd.xlane.f32.xlu0 %v575
        %v577 = vpop.xlane.xlu0 %576
        %v578 = vrot.slane %v577, 4
        %v579 = vadd.f32 %v577, %v578
        %v580 = vrot.slane %v579, 2
        %v581 = vadd.f32 %v579, %v580
        %v582 = vrot.slane %v581, 1
        %v583 = vadd.f32 %v581, %v582
        %v584 = vmin.f32 %v583, %v557
        %vm585 = vcmp.gt.f32.partialorder %v568, -1e+29
        %v586 = vsel %vm585, %v584, 0.0
        %v587 = vmul.f32 %v586, %v568
        %v588 = vadd.f32 %v556, %v587
        %v589 = vsub.f32 %v557, %v586
        %v590 = vsel %vm571, %v474, -1e+30
        %v591 = vsel %vm572, %v481, -1e+30
        %v592 = vmax.f32 %v590, %v591
        %593 = vmax.xlane.f32.xlu0 %v592
        %v594 = vpop.xlane.xlu0 %593
        %v595 = vrot.slane %v594, 4
        %v596 = vmax.f32 %v594, %v595
        %v597 = vrot.slane %v596, 2
        %v598 = vmax.f32 %v596, %v597
        %v599 = vrot.slane %v598, 1
        %v600 = vmax.f32 %v598, %v599
        %vm601 = vcmp.eq.f32.partialorder %v474, %v600
        %vm602 = vcmp.eq.f32.partialorder %v481, %v600
        %vm603 = vcmp.lt.f32.partialorder %v474, %v600
        %vm604 = vcmp.lt.f32.partialorder %v481, %v600
        %v605 = vsel %vm601, %v488, 0.0
        %v606 = vsel %vm602, %v495, 0.0
        %v607 = vadd.f32 %v605, %v606
        %608 = vadd.xlane.f32.xlu0 %v607
        %v609 = vpop.xlane.xlu0 %608
        %v610 = vrot.slane %v609, 4
        %v611 = vadd.f32 %v609, %v610
        %v612 = vrot.slane %v611, 2
        %v613 = vadd.f32 %v611, %v612
        %v614 = vrot.slane %v613, 1
        %v615 = vadd.f32 %v613, %v614
        %v616 = vmin.f32 %v615, %v589
        %vm617 = vcmp.gt.f32.partialorder %v600, -1e+29
        %v618 = vsel %vm617, %v616, 0.0
        %v619 = vmul.f32 %v618, %v600
        %v620 = vadd.f32 %v588, %v619
        %v621 = vsub.f32 %v589, %v618
        %v622 = vsel %vm603, %v474, -1e+30
        %v623 = vsel %vm604, %v481, -1e+30
        %v624 = vmax.f32 %v622, %v623
        %625 = vmax.xlane.f32.xlu0 %v624
        %v626 = vpop.xlane.xlu0 %625
        %v627 = vrot.slane %v626, 4
        %v628 = vmax.f32 %v626, %v627
        %v629 = vrot.slane %v628, 2
        %v630 = vmax.f32 %v628, %v629
        %v631 = vrot.slane %v630, 1
        %v632 = vmax.f32 %v630, %v631
        %vm633 = vcmp.eq.f32.partialorder %v474, %v632
        %vm634 = vcmp.eq.f32.partialorder %v481, %v632
        %vm635 = vcmp.lt.f32.partialorder %v474, %v632
        %vm636 = vcmp.lt.f32.partialorder %v481, %v632
        %v637 = vsel %vm633, %v488, 0.0
        %v638 = vsel %vm634, %v495, 0.0
        %v639 = vadd.f32 %v637, %v638
        %640 = vadd.xlane.f32.xlu0 %v639
        %v641 = vpop.xlane.xlu0 %640
        %v642 = vrot.slane %v641, 4
        %v643 = vadd.f32 %v641, %v642
        %v644 = vrot.slane %v643, 2
        %v645 = vadd.f32 %v643, %v644
        %v646 = vrot.slane %v645, 1
        %v647 = vadd.f32 %v645, %v646
        %v648 = vmin.f32 %v647, %v621
        %vm649 = vcmp.gt.f32.partialorder %v632, -1e+29
        %v650 = vsel %vm649, %v648, 0.0
        %v651 = vmul.f32 %v650, %v632
        %v652 = vadd.f32 %v620, %v651
        %v653 = vsub.f32 %v621, %v650
        %v654 = vsel %vm635, %v474, -1e+30
        %v655 = vsel %vm636, %v481, -1e+30
        %v656 = vmax.f32 %v654, %v655
        %657 = vmax.xlane.f32.xlu0 %v656
        %v658 = vpop.xlane.xlu0 %657
        %v659 = vrot.slane %v658, 4
        %v660 = vmax.f32 %v658, %v659
        %v661 = vrot.slane %v660, 2
        %v662 = vmax.f32 %v660, %v661
        %v663 = vrot.slane %v662, 1
        %v664 = vmax.f32 %v662, %v663
        %vm665 = vcmp.eq.f32.partialorder %v474, %v664
        %vm666 = vcmp.eq.f32.partialorder %v481, %v664
        %vm667 = vcmp.lt.f32.partialorder %v474, %v664
        %vm668 = vcmp.lt.f32.partialorder %v481, %v664
        %v669 = vsel %vm665, %v488, 0.0
        %v670 = vsel %vm666, %v495, 0.0
        %v671 = vadd.f32 %v669, %v670
        %672 = vadd.xlane.f32.xlu0 %v671
        %v673 = vpop.xlane.xlu0 %672
        %v674 = vrot.slane %v673, 4
        %v675 = vadd.f32 %v673, %v674
        %v676 = vrot.slane %v675, 2
        %v677 = vadd.f32 %v675, %v676
        %v678 = vrot.slane %v677, 1
        %v679 = vadd.f32 %v677, %v678
        %v680 = vmin.f32 %v679, %v653
        %vm681 = vcmp.gt.f32.partialorder %v664, -1e+29
        %v682 = vsel %vm681, %v680, 0.0
        %v683 = vmul.f32 %v682, %v664
        %v684 = vadd.f32 %v652, %v683
        %v685 = vsub.f32 %v653, %v682
        %v686 = vsel %vm667, %v474, -1e+30
        %v687 = vsel %vm668, %v481, -1e+30
        %v688 = vmax.f32 %v686, %v687
        %689 = vmax.xlane.f32.xlu0 %v688
        %v690 = vpop.xlane.xlu0 %689
        %v691 = vrot.slane %v690, 4
        %v692 = vmax.f32 %v690, %v691
        %v693 = vrot.slane %v692, 2
        %v694 = vmax.f32 %v692, %v693
        %v695 = vrot.slane %v694, 1
        %v696 = vmax.f32 %v694, %v695
        %vm697 = vcmp.eq.f32.partialorder %v474, %v696
        %vm698 = vcmp.eq.f32.partialorder %v481, %v696
        %vm699 = vcmp.lt.f32.partialorder %v474, %v696
        %vm700 = vcmp.lt.f32.partialorder %v481, %v696
        %v701 = vsel %vm697, %v488, 0.0
        %v702 = vsel %vm698, %v495, 0.0
        %v703 = vadd.f32 %v701, %v702
        %704 = vadd.xlane.f32.xlu0 %v703
        %v705 = vpop.xlane.xlu0 %704
        %v706 = vrot.slane %v705, 4
        %v707 = vadd.f32 %v705, %v706
        %v708 = vrot.slane %v707, 2
        %v709 = vadd.f32 %v707, %v708
        %v710 = vrot.slane %v709, 1
        %v711 = vadd.f32 %v709, %v710
        %v712 = vmin.f32 %v711, %v685
        %vm713 = vcmp.gt.f32.partialorder %v696, -1e+29
        %v714 = vsel %vm713, %v712, 0.0
        %v715 = vmul.f32 %v714, %v696
        %v716 = vadd.f32 %v684, %v715
        %v717 = vsub.f32 %v685, %v714
        %v718 = vsel %vm699, %v474, -1e+30
        %v719 = vsel %vm700, %v481, -1e+30
        %v720 = vmax.f32 %v718, %v719
        %721 = vmax.xlane.f32.xlu0 %v720
        %v722 = vpop.xlane.xlu0 %721
        %v723 = vrot.slane %v722, 4
        %v724 = vmax.f32 %v722, %v723
        %v725 = vrot.slane %v724, 2
        %v726 = vmax.f32 %v724, %v725
        %v727 = vrot.slane %v726, 1
        %v728 = vmax.f32 %v726, %v727
        %vm729 = vcmp.eq.f32.partialorder %v474, %v728
        %vm730 = vcmp.eq.f32.partialorder %v481, %v728
        %vm731 = vcmp.lt.f32.partialorder %v474, %v728
        %vm732 = vcmp.lt.f32.partialorder %v481, %v728
        %v733 = vsel %vm729, %v488, 0.0
        %v734 = vsel %vm730, %v495, 0.0
        %v735 = vadd.f32 %v733, %v734
        %736 = vadd.xlane.f32.xlu0 %v735
        %v737 = vpop.xlane.xlu0 %736
        %v738 = vrot.slane %v737, 4
        %v739 = vadd.f32 %v737, %v738
        %v740 = vrot.slane %v739, 2
        %v741 = vadd.f32 %v739, %v740
        %v742 = vrot.slane %v741, 1
        %v743 = vadd.f32 %v741, %v742
        %v744 = vmin.f32 %v743, %v717
        %vm745 = vcmp.gt.f32.partialorder %v728, -1e+29
        %v746 = vsel %vm745, %v744, 0.0
        %v747 = vmul.f32 %v746, %v728
        %v748 = vadd.f32 %v716, %v747
        %v749 = vsub.f32 %v717, %v746
        %v750 = vsel %vm731, %v474, -1e+30
        %v751 = vsel %vm732, %v481, -1e+30
        %v752 = vmax.f32 %v750, %v751
        %753 = vmax.xlane.f32.xlu0 %v752
        %v754 = vpop.xlane.xlu0 %753
        %v755 = vrot.slane %v754, 4
        %v756 = vmax.f32 %v754, %v755
        %v757 = vrot.slane %v756, 2
        %v758 = vmax.f32 %v756, %v757
        %v759 = vrot.slane %v758, 1
        %v760 = vmax.f32 %v758, %v759
        %vm761 = vcmp.eq.f32.partialorder %v474, %v760
        %vm762 = vcmp.eq.f32.partialorder %v481, %v760
        %vm763 = vcmp.lt.f32.partialorder %v474, %v760
        %vm764 = vcmp.lt.f32.partialorder %v481, %v760
        %v765 = vsel %vm761, %v488, 0.0
        %v766 = vsel %vm762, %v495, 0.0
        %v767 = vadd.f32 %v765, %v766
        %768 = vadd.xlane.f32.xlu0 %v767
        %v769 = vpop.xlane.xlu0 %768
        %v770 = vrot.slane %v769, 4
        %v771 = vadd.f32 %v769, %v770
        %v772 = vrot.slane %v771, 2
        %v773 = vadd.f32 %v771, %v772
        %v774 = vrot.slane %v773, 1
        %v775 = vadd.f32 %v773, %v774
        %v776 = vmin.f32 %v775, %v749
        %vm777 = vcmp.gt.f32.partialorder %v760, -1e+29
        %v778 = vsel %vm777, %v776, 0.0
        %v779 = vmul.f32 %v778, %v760
        %v780 = vadd.f32 %v748, %v779
        %v781 = vsub.f32 %v749, %v778
        %v782 = vsel %vm763, %v474, -1e+30
        %v783 = vsel %vm764, %v481, -1e+30
        %v784 = vmax.f32 %v782, %v783
        %785 = vmax.xlane.f32.xlu0 %v784
        %v786 = vpop.xlane.xlu0 %785
        %v787 = vrot.slane %v786, 4
        %v788 = vmax.f32 %v786, %v787
        %v789 = vrot.slane %v788, 2
        %v790 = vmax.f32 %v788, %v789
        %v791 = vrot.slane %v790, 1
        %v792 = vmax.f32 %v790, %v791
        %vm793 = vcmp.eq.f32.partialorder %v474, %v792
        %vm794 = vcmp.eq.f32.partialorder %v481, %v792
        %vm795 = vcmp.lt.f32.partialorder %v474, %v792
        %vm796 = vcmp.lt.f32.partialorder %v481, %v792
        %v797 = vsel %vm793, %v488, 0.0
        %v798 = vsel %vm794, %v495, 0.0
        %v799 = vadd.f32 %v797, %v798
        %800 = vadd.xlane.f32.xlu0 %v799
        %v801 = vpop.xlane.xlu0 %800
        %v802 = vrot.slane %v801, 4
        %v803 = vadd.f32 %v801, %v802
        %v804 = vrot.slane %v803, 2
        %v805 = vadd.f32 %v803, %v804
        %v806 = vrot.slane %v805, 1
        %v807 = vadd.f32 %v805, %v806
        %v808 = vmin.f32 %v807, %v781
        %vm809 = vcmp.gt.f32.partialorder %v792, -1e+29
        %v810 = vsel %vm809, %v808, 0.0
        %v811 = vmul.f32 %v810, %v792
        %v812 = vadd.f32 %v780, %v811
        %v813 = vsub.f32 %v781, %v810
        %v814 = vsel %vm795, %v474, -1e+30
        %v815 = vsel %vm796, %v481, -1e+30
        %v816 = vmax.f32 %v814, %v815
        %817 = vmax.xlane.f32.xlu0 %v816
        %v818 = vpop.xlane.xlu0 %817
        %v819 = vrot.slane %v818, 4
        %v820 = vmax.f32 %v818, %v819
        %v821 = vrot.slane %v820, 2
        %v822 = vmax.f32 %v820, %v821
        %v823 = vrot.slane %v822, 1
        %v824 = vmax.f32 %v822, %v823
        %vm825 = vcmp.eq.f32.partialorder %v474, %v824
        %vm826 = vcmp.eq.f32.partialorder %v481, %v824
        %vm827 = vcmp.lt.f32.partialorder %v474, %v824
        %vm828 = vcmp.lt.f32.partialorder %v481, %v824
        %v829 = vsel %vm825, %v488, 0.0
        %v830 = vsel %vm826, %v495, 0.0
        %v831 = vadd.f32 %v829, %v830
        %832 = vadd.xlane.f32.xlu0 %v831
        %v833 = vpop.xlane.xlu0 %832
        %v834 = vrot.slane %v833, 4
        %v835 = vadd.f32 %v833, %v834
        %v836 = vrot.slane %v835, 2
        %v837 = vadd.f32 %v835, %v836
        %v838 = vrot.slane %v837, 1
        %v839 = vadd.f32 %v837, %v838
        %v840 = vmin.f32 %v839, %v813
        %vm841 = vcmp.gt.f32.partialorder %v824, -1e+29
        %v842 = vsel %vm841, %v840, 0.0
        %v843 = vmul.f32 %v842, %v824
        %v844 = vadd.f32 %v812, %v843
        %v845 = vsub.f32 %v813, %v842
        %v846 = vsel %vm827, %v474, -1e+30
        %v847 = vsel %vm828, %v481, -1e+30
        %v848 = vmax.f32 %v846, %v847
        %849 = vmax.xlane.f32.xlu0 %v848
        %v850 = vpop.xlane.xlu0 %849
        %v851 = vrot.slane %v850, 4
        %v852 = vmax.f32 %v850, %v851
        %v853 = vrot.slane %v852, 2
        %v854 = vmax.f32 %v852, %v853
        %v855 = vrot.slane %v854, 1
        %v856 = vmax.f32 %v854, %v855
        %vm857 = vcmp.eq.f32.partialorder %v474, %v856
        %vm858 = vcmp.eq.f32.partialorder %v481, %v856
        %vm859 = vcmp.lt.f32.partialorder %v474, %v856
        %vm860 = vcmp.lt.f32.partialorder %v481, %v856
        %v861 = vsel %vm857, %v488, 0.0
        %v862 = vsel %vm858, %v495, 0.0
        %v863 = vadd.f32 %v861, %v862
        %864 = vadd.xlane.f32.xlu0 %v863
        %v865 = vpop.xlane.xlu0 %864
        %v866 = vrot.slane %v865, 4
        %v867 = vadd.f32 %v865, %v866
        %v868 = vrot.slane %v867, 2
        %v869 = vadd.f32 %v867, %v868
        %v870 = vrot.slane %v869, 1
        %v871 = vadd.f32 %v869, %v870
        %v872 = vmin.f32 %v871, %v845
        %vm873 = vcmp.gt.f32.partialorder %v856, -1e+29
        %v874 = vsel %vm873, %v872, 0.0
        %v875 = vmul.f32 %v874, %v856
        %v876 = vadd.f32 %v844, %v875
        %v877 = vsub.f32 %v845, %v874
        %v878 = vsel %vm859, %v474, -1e+30
        %v879 = vsel %vm860, %v481, -1e+30
        %v880 = vmax.f32 %v878, %v879
        %881 = vmax.xlane.f32.xlu0 %v880
        %v882 = vpop.xlane.xlu0 %881
        %v883 = vrot.slane %v882, 4
        %v884 = vmax.f32 %v882, %v883
        %v885 = vrot.slane %v884, 2
        %v886 = vmax.f32 %v884, %v885
        %v887 = vrot.slane %v886, 1
        %v888 = vmax.f32 %v886, %v887
        %vm889 = vcmp.eq.f32.partialorder %v474, %v888
        %vm890 = vcmp.eq.f32.partialorder %v481, %v888
        %vm891 = vcmp.lt.f32.partialorder %v474, %v888
        %vm892 = vcmp.lt.f32.partialorder %v481, %v888
        %v893 = vsel %vm889, %v488, 0.0
        %v894 = vsel %vm890, %v495, 0.0
        %v895 = vadd.f32 %v893, %v894
        %896 = vadd.xlane.f32.xlu0 %v895
        %v897 = vpop.xlane.xlu0 %896
        %v898 = vrot.slane %v897, 4
        %v899 = vadd.f32 %v897, %v898
        %v900 = vrot.slane %v899, 2
        %v901 = vadd.f32 %v899, %v900
        %v902 = vrot.slane %v901, 1
        %v903 = vadd.f32 %v901, %v902
        %v904 = vmin.f32 %v903, %v877
        %vm905 = vcmp.gt.f32.partialorder %v888, -1e+29
        %v906 = vsel %vm905, %v904, 0.0
        %v907 = vmul.f32 %v906, %v888
        %v908 = vadd.f32 %v876, %v907
        %v909 = vsub.f32 %v877, %v906
        %v910 = vsel %vm891, %v474, -1e+30
        %v911 = vsel %vm892, %v481, -1e+30
        %v912 = vmax.f32 %v910, %v911
        %913 = vmax.xlane.f32.xlu0 %v912
        %v914 = vpop.xlane.xlu0 %913
        %v915 = vrot.slane %v914, 4
        %v916 = vmax.f32 %v914, %v915
        %v917 = vrot.slane %v916, 2
        %v918 = vmax.f32 %v916, %v917
        %v919 = vrot.slane %v918, 1
        %v920 = vmax.f32 %v918, %v919
        %vm921 = vcmp.eq.f32.partialorder %v474, %v920
        %vm922 = vcmp.eq.f32.partialorder %v481, %v920
        %vm923 = vcmp.lt.f32.partialorder %v474, %v920
        %vm924 = vcmp.lt.f32.partialorder %v481, %v920
        %v925 = vsel %vm921, %v488, 0.0
        %v926 = vsel %vm922, %v495, 0.0
        %v927 = vadd.f32 %v925, %v926
        %928 = vadd.xlane.f32.xlu0 %v927
        %v929 = vpop.xlane.xlu0 %928
        %v930 = vrot.slane %v929, 4
        %v931 = vadd.f32 %v929, %v930
        %v932 = vrot.slane %v931, 2
        %v933 = vadd.f32 %v931, %v932
        %v934 = vrot.slane %v933, 1
        %v935 = vadd.f32 %v933, %v934
        %v936 = vmin.f32 %v935, %v909
        %vm937 = vcmp.gt.f32.partialorder %v920, -1e+29
        %v938 = vsel %vm937, %v936, 0.0
        %v939 = vmul.f32 %v938, %v920
        %v940 = vadd.f32 %v908, %v939
        %v941 = vsub.f32 %v909, %v938
        %v942 = vsel %vm923, %v474, -1e+30
        %v943 = vsel %vm924, %v481, -1e+30
        %v944 = vmax.f32 %v942, %v943
        %945 = vmax.xlane.f32.xlu0 %v944
        %v946 = vpop.xlane.xlu0 %945
        %v947 = vrot.slane %v946, 4
        %v948 = vmax.f32 %v946, %v947
        %v949 = vrot.slane %v948, 2
        %v950 = vmax.f32 %v948, %v949
        %v951 = vrot.slane %v950, 1
        %v952 = vmax.f32 %v950, %v951
        %vm953 = vcmp.eq.f32.partialorder %v474, %v952
        %vm954 = vcmp.eq.f32.partialorder %v481, %v952
        %vm955 = vcmp.lt.f32.partialorder %v474, %v952
        %vm956 = vcmp.lt.f32.partialorder %v481, %v952
        %v957 = vsel %vm953, %v488, 0.0
        %v958 = vsel %vm954, %v495, 0.0
        %v959 = vadd.f32 %v957, %v958
        %960 = vadd.xlane.f32.xlu0 %v959
        %v961 = vpop.xlane.xlu0 %960
        %v962 = vrot.slane %v961, 4
        %v963 = vadd.f32 %v961, %v962
        %v964 = vrot.slane %v963, 2
        %v965 = vadd.f32 %v963, %v964
        %v966 = vrot.slane %v965, 1
        %v967 = vadd.f32 %v965, %v966
        %v968 = vmin.f32 %v967, %v941
        %vm969 = vcmp.gt.f32.partialorder %v952, -1e+29
        %v970 = vsel %vm969, %v968, 0.0
        %v971 = vmul.f32 %v970, %v952
        %v972 = vadd.f32 %v940, %v971
        %v973 = vsub.f32 %v941, %v970
        %v974 = vsel %vm955, %v474, -1e+30
        %v975 = vsel %vm956, %v481, -1e+30
        %v976 = vmax.f32 %v974, %v975
        %977 = vmax.xlane.f32.xlu0 %v976
        %v978 = vpop.xlane.xlu0 %977
        %v979 = vrot.slane %v978, 4
        %v980 = vmax.f32 %v978, %v979
        %v981 = vrot.slane %v980, 2
        %v982 = vmax.f32 %v980, %v981
        %v983 = vrot.slane %v982, 1
        %v984 = vmax.f32 %v982, %v983
        %vm985 = vcmp.eq.f32.partialorder %v474, %v984
        %vm986 = vcmp.eq.f32.partialorder %v481, %v984
        %v987 = vsel %vm985, %v488, 0.0
        %v988 = vsel %vm986, %v495, 0.0
        %v989 = vadd.f32 %v987, %v988
        %990 = vadd.xlane.f32.xlu0 %v989
        %v991 = vpop.xlane.xlu0 %990
        %v992 = vrot.slane %v991, 4
        %v993 = vadd.f32 %v991, %v992
        %v994 = vrot.slane %v993, 2
        %v995 = vadd.f32 %v993, %v994
        %v996 = vrot.slane %v995, 1
        %v997 = vadd.f32 %v995, %v996
        %v998 = vmin.f32 %v997, %v973
        %vm999 = vcmp.gt.f32.partialorder %v984, -1e+29
        %v1000 = vsel %vm999, %v998, 0.0
        %v1001 = vmul.f32 %v1000, %v984
        %v1002 = vadd.f32 %v972, %v1001
        %v1003 = vrcp.pop 16.0
        %v1004 = vmul.f32 %v1002, %v1003
        %1005 = vst [vmem:[%s194] sm:$0x1] %v1004
        %s1006 = sand.u32 %s82, 1
        %s1007 = scalar_lea.sflag [#allocation4], %s1006
        %s1008 = sand.u32 %s82, 1
        %s1009 = scalar_lea.vmem [#allocation7], %s1008
        // Predicated region
        $region37: #{tpu_custom_call.1} parent=27 // pred_check
          %p1010 = pneg %p92
        $region38: #{tpu_custom_call.1} parent=27 // pred_check_branch
          %1012 = sbr.rel (%p1010) target = $region40
        $region39: #{tpu_custom_call.1} parent=27 // pred_region
          %s1014 = ssub.s32 16, 16
          %1015 = vsyncadd %s1007, %s1014
          %s1016 = smul.addr %s22, 16
          %s1017 = scalar_lea.hbm %s2, %s1016
          %s1019 = sshll.u32 %s1009, 4
          %s1020 = int_to_ptr.vmem [resolvable:$true] %s1019
          %1022 = dma.vmem_to_hbm [thread:$0]  %s1020, 16, %s1017, %s1007
        $region40: #{tpu_custom_call.1} parent=27 // pred_fallthru
          _
      $region28: #{tpu_custom_call.1} parent=5 // pred_fallthru
        _
      %p1023 = scmp.le.s32.totalorder 2, %s17
      // Predicated region
      $region41: #{tpu_custom_call.1} parent=5 // pred_check
        %p1024 = pneg %p1023
      $region42: #{tpu_custom_call.1} parent=5 // pred_check_branch
        %1026 = sbr.rel (%p1024) target = $region44
      $region43: #{tpu_custom_call.1} parent=5 // pred_region
        %s1027 = ssub.s32 %s17, 2
        // Predicated region
        $region45: #{tpu_custom_call.1} parent=43 // pred_check
          %p1028 = pneg %p98
        $region46: #{tpu_custom_call.1} parent=43 // pred_check_branch
          %1030 = sbr.rel (%p1028) target = $region48
        $region47: #{tpu_custom_call.1} parent=43 // pred_region
          %s1031 = sand.u32 %s83, 1
          %s1032 = scalar_lea.sflag [#allocation4], %s1031
          %s1033 = sand.u32 %s83, 1
          %s1034 = scalar_lea.vmem [#allocation7], %s1033
          %1035 = dma.done %s1032, 16
        $region48: #{tpu_custom_call.1} parent=43 // pred_fallthru
          _
      $region44: #{tpu_custom_call.1} parent=5 // pred_fallthru
        _
    $region6: #{tpu_custom_call.1} parent=1 // loop_footer
      %s21 = sadd.s32 1, %s17
    $region7: #{tpu_custom_call.1} parent=1 // loop_footer_branch
      %16 = sbr.rel target = $region3
    $region8: #{tpu_custom_call.1} parent=1 // loop_exit
      _
    %1036 = vsyncpa [#allocation3], 1
    %s1037 = scalar_lea.sflag [#allocation3], 1
    %1038 = vsyncpa %s1037, 1
    %1039 = vsyncpa [#allocation6], 1
    %s1040 = scalar_lea.sflag [#allocation6], 1
    %1041 = vsyncpa %s1040, 1
    %1042 = vsyncpa [#allocation4], 1
    %s1043 = scalar_lea.sflag [#allocation4], 1
    %1044 = vsyncpa %s1043, 1

</llo_original>
